<compile_context>
chip_gen: v7x
topology: tpu7x:2x2x1
jax: 0.10.0
libtpu: 0.0.40
codegen_flags: <defaults>
</compile_context>

<pallas_src>
import functools

import jax
import jax.numpy as jnp
from jax.experimental import pallas as pl
from jax.experimental.pallas import tpu as pltpu

BN_EPS = 1e-5
_VMEM_SPEC = pl.BlockSpec(memory_space=pltpu.MemorySpace.VMEM)


# ---------------------------------------------------------------------------
# Fused kernel: 5 LSTM "cells" (T=1, zero initial state) + folded BN affines + head.
# refs layout: x, then per layer [Wi, Wg, Wo, bi, bg, bo] x 5, then w_head, b_head, out.
# ---------------------------------------------------------------------------
def _fused_forward_kernel(*refs):
    x_ref = refs[0]
    out_ref = refs[-1]
    h = x_ref[...]                                    # (Bp, D_in)
    idx = 1
    for _ in range(5):
        wi_ref, wg_ref, wo_ref, bi_ref, bg_ref, bo_ref = refs[idx:idx + 6]
        idx += 6
        # Per-gate MXU matmuls -> lane-aligned (Bp, H) tiles. f gate dropped (c0 = 0, T = 1).
        i = jax.nn.sigmoid(
            jnp.dot(h, wi_ref[...], preferred_element_type=jnp.float32) + bi_ref[...])
        g = jnp.tanh(
            jnp.dot(h, wg_ref[...], preferred_element_type=jnp.float32) + bg_ref[...])
        o = jax.nn.sigmoid(
            jnp.dot(h, wo_ref[...], preferred_element_type=jnp.float32) + bo_ref[...])
        h = o * jnp.tanh(i * g)                       # (Bp, H)
    w_head_ref, b_head_ref = refs[idx], refs[idx + 1]
    # bn5 + Linear(32 -> 1) folded into a VPU multiply + lane reduce (no N=1 MXU op).
    logit = jnp.sum(h * w_head_ref[...], axis=-1, keepdims=True) + b_head_ref[...]
    out_ref[...] = jax.nn.sigmoid(logit)              # (Bp, 1)


# ---------------------------------------------------------------------------
# Parameter init (deterministic, mirrors PyTorch defaults: U(-1/sqrt(H), 1/sqrt(H)))
# Stored in PyTorch layout; fold_params() converts once for inference.
# ---------------------------------------------------------------------------
def init_params(key, input_dim, time_steps):
    sizes = [(input_dim, 128), (128, 128), (128, 64), (64, 32), (32, 32)]
    keys = jax.random.split(key, 4 * len(sizes) + 2)
    ki = 0
    lstm = []
    for d_in, h in sizes:
        bound = 1.0 / (h ** 0.5)
        w_ih = jax.random.uniform(keys[ki], (4 * h, d_in), jnp.float32, -bound, bound); ki += 1
        w_hh = jax.random.uniform(keys[ki], (4 * h, h), jnp.float32, -bound, bound); ki += 1
        b_ih = jax.random.uniform(keys[ki], (4 * h,), jnp.float32, -bound, bound); ki += 1
        b_hh = jax.random.uniform(keys[ki], (4 * h,), jnp.float32, -bound, bound); ki += 1
        lstm.append((w_ih, w_hh, b_ih, b_hh))
    bn = []
    for c in [time_steps] * 4 + [32]:
        bn.append((jnp.ones((c,), jnp.float32),    # gamma
                   jnp.zeros((c,), jnp.float32),   # beta
                   jnp.zeros((c,), jnp.float32),   # running_mean
                   jnp.ones((c,), jnp.float32)))   # running_var
    bound = 1.0 / (32 ** 0.5)
    w_fc = jax.random.uniform(keys[ki], (1, 32), jnp.float32, -bound, bound); ki += 1
    b_fc = jax.random.uniform(keys[ki], (1,), jnp.float32, -bound, bound)
    return {"lstm": lstm, "bn": bn, "fc": (w_fc, b_fc)}


# ---------------------------------------------------------------------------
# One-time host-side folding: transpose per-gate weights, pre-sum biases, and fold the
# eval-mode BN affines of bn1..bn4 into the next layer / bn5 into the fc head.
# Produces the flat list of kernel operands (done once, outside the jitted forward).
# ---------------------------------------------------------------------------
def fold_params(params):
    folded = []
    pre_scale = jnp.float32(1.0)   # BN affine applied to this layer's INPUT (scalar; T = 1)
    pre_shift = jnp.float32(0.0)
    for li in range(5):
        w_ih, w_hh, b_ih, b_hh = params["lstm"][li]
        H = w_hh.shape[1]
        b = b_ih + b_hh
        def gate(k, pre_scale=pre_scale, pre_shift=pre_shift, w_ih=w_ih, b=b, H=H):
            W = jnp.transpose(w_ih[k * H:(k + 1) * H, :])          # (D_in, H)
            bg = b[k * H:(k + 1) * H]
            Wf = pre_scale * W                                     # fold input affine scale
            bf = bg + pre_shift * jnp.sum(W, axis=0)               # fold input affine shift
            return Wf, bf[None, :]
        Wi, bi = gate(0)   # PyTorch gate order: i, f, g, o  (f unused: c0 = 0, T = 1)
        Wg, bg_ = gate(2)
        Wo, bo = gate(3)
        folded += [Wi, Wg, Wo, bi, bg_, bo]
        if li < 4:
            gamma, beta, rm, rv = params["bn"][li]                 # length-1 vectors (T = 1)
            s = gamma[0] / jnp.sqrt(rv[0] + BN_EPS)
            t = beta[0] - rm[0] * s
            pre_scale, pre_shift = s, t
    # bn5 (per-channel over 32) folded into fc weight/bias.
    gamma5, beta5, rm5, rv5 = params["bn"][4]
    s5 = gamma5 / jnp.sqrt(rv5 + BN_EPS)
    t5 = beta5 - rm5 * s5
    w_fc, b_fc = params["fc"]                                      # (1, 32), (1,)
    w_head = (w_fc[0] * s5)[None, :]                               # (1, 32)
    b_head = (b_fc[0] + jnp.sum(w_fc[0] * t5)).reshape(1, 1)       # (1, 1)
    folded += [w_head, b_head]
    return folded


# ---------------------------------------------------------------------------
# Forward: pad B to a sublane multiple, one fused pallas_call, slice back.
# ---------------------------------------------------------------------------
def lstm_model_forward(folded, x):
    B = x.shape[0]
    Bp = max(8, ((B + 7) // 8) * 8)
    x = x.astype(jnp.float32)
    if Bp != B:
        x = jnp.pad(x, ((0, Bp - B), (0, 0)))
    out = pl.pallas_call(
        _fused_forward_kernel,
        out_shape=jax.ShapeDtypeStruct((Bp, 1), jnp.float32),
        in_specs=[_VMEM_SPEC] * (1 + len(folded)),
        out_specs=_VMEM_SPEC,
    )(x, *folded)
    return out[:B]


# ---------------------------------------------------------------------------
# Pure-JAX reference implementing the FULL eval-mode math (recurrent term, all 4 gates,
# un-folded BN) to validate the kernel's algebraic simplifications.
# ---------------------------------------------------------------------------
def reference_forward(params, x):
    h = x[:, None, :].astype(jnp.float32)             # (B, T=1, D)
    for li in range(5):
        w_ih, w_hh, b_ih, b_hh = params["lstm"][li]
        B, T, _ = h.shape
        H = w_hh.shape[1]
        ht = jnp.zeros((B, H), jnp.float32)
        ct = jnp.zeros((B, H), jnp.float32)
        outs = []
        for t in range(T):
            gates = h[:, t, :] @ w_ih.T + ht @ w_hh.T + b_ih + b_hh
            i = jax.nn.sigmoid(gates[:, :H])
            f = jax.nn.sigmoid(gates[:, H:2 * H])
            g = jnp.tanh(gates[:, 2 * H:3 * H])
            o = jax.nn.sigmoid(gates[:, 3 * H:])
            ct = f * ct + i * g
            ht = o * jnp.tanh(ct)
            outs.append(ht)
        h = jnp.stack(outs, axis=1)
        if li < 4:
            gamma, beta, rm, rv = params["bn"][li]
            scale = gamma / jnp.sqrt(rv + BN_EPS)
            h = h * scale[None, :, None] + (beta - rm * scale)[None, :, None]
    hl = h[:, -1, :]
    gamma, beta, rm, rv = params["bn"][4]
    scale = gamma / jnp.sqrt(rv + BN_EPS)
    hl = hl * scale[None, :] + (beta - rm * scale)[None, :]
    w_fc, b_fc = params["fc"]
    return jax.nn.sigmoid(hl @ w_fc.T + b_fc)


if __name__ == "__main__":
    input_dim, time_steps, batch = 16, 1, 8   # time_steps must be 1 for the torch forward to run
    key = jax.random.PRNGKey(0)
    pkey, xkey = jax.random.split(key)
    params = init_params(pkey, input_dim, time_steps)
    folded = fold_params(params)              # one-time host-side weight folding
    x = jax.random.normal(xkey, (batch, input_dim), dtype=jnp.float32)

    fwd = jax.jit(lstm_model_forward)
    out = fwd(folded, x)
    jax.block_until_ready(out)

    ref = reference_forward(params, x)
    assert out.shape == (batch, 1), out.shape
    assert jnp.allclose(out, ref, atol=1e-3, rtol=1e-3), (out, ref)
    print("KERNEL_OK")
</pallas_src>

<mosaic_0001>
module attributes {stable_mosaic.version = 11 : i64} {
  func.func @_fused_forward_kernel(%arg0: memref<8x16xf32, #tpu.memory_space<vmem>>, %arg1: memref<16x128xf32, #tpu.memory_space<vmem>>, %arg2: memref<16x128xf32, #tpu.memory_space<vmem>>, %arg3: memref<16x128xf32, #tpu.memory_space<vmem>>, %arg4: memref<1x128xf32, #tpu.memory_space<vmem>>, %arg5: memref<1x128xf32, #tpu.memory_space<vmem>>, %arg6: memref<1x128xf32, #tpu.memory_space<vmem>>, %arg7: memref<128x128xf32, #tpu.memory_space<vmem>>, %arg8: memref<128x128xf32, #tpu.memory_space<vmem>>, %arg9: memref<128x128xf32, #tpu.memory_space<vmem>>, %arg10: memref<1x128xf32, #tpu.memory_space<vmem>>, %arg11: memref<1x128xf32, #tpu.memory_space<vmem>>, %arg12: memref<1x128xf32, #tpu.memory_space<vmem>>, %arg13: memref<128x64xf32, #tpu.memory_space<vmem>>, %arg14: memref<128x64xf32, #tpu.memory_space<vmem>>, %arg15: memref<128x64xf32, #tpu.memory_space<vmem>>, %arg16: memref<1x64xf32, #tpu.memory_space<vmem>>, %arg17: memref<1x64xf32, #tpu.memory_space<vmem>>, %arg18: memref<1x64xf32, #tpu.memory_space<vmem>>, %arg19: memref<64x32xf32, #tpu.memory_space<vmem>>, %arg20: memref<64x32xf32, #tpu.memory_space<vmem>>, %arg21: memref<64x32xf32, #tpu.memory_space<vmem>>, %arg22: memref<1x32xf32, #tpu.memory_space<vmem>>, %arg23: memref<1x32xf32, #tpu.memory_space<vmem>>, %arg24: memref<1x32xf32, #tpu.memory_space<vmem>>, %arg25: memref<32x32xf32, #tpu.memory_space<vmem>>, %arg26: memref<32x32xf32, #tpu.memory_space<vmem>>, %arg27: memref<32x32xf32, #tpu.memory_space<vmem>>, %arg28: memref<1x32xf32, #tpu.memory_space<vmem>>, %arg29: memref<1x32xf32, #tpu.memory_space<vmem>>, %arg30: memref<1x32xf32, #tpu.memory_space<vmem>>, %arg31: memref<1x32xf32, #tpu.memory_space<vmem>>, %arg32: memref<1x1xf32, #tpu.memory_space<vmem>>, %arg33: memref<8x1xf32, #tpu.memory_space<vmem>>) attributes {dimension_semantics = [], scalar_prefetch = 0 : i64, scratch_operands = 0 : i64, tpu.core_type = #tpu.core_type<tc>} {
    %c0 = arith.constant 0 : index
    %c0_0 = arith.constant 0 : index
    %0 = vector.load %arg0[%c0, %c0_0] : memref<8x16xf32, #tpu.memory_space<vmem>>, vector<8x16xf32>
    %c0_1 = arith.constant 0 : index
    %c0_2 = arith.constant 0 : index
    %1 = vector.load %arg1[%c0_1, %c0_2] : memref<16x128xf32, #tpu.memory_space<vmem>>, vector<16x128xf32>
    %cst = arith.constant dense<0.000000e+00> : vector<8x128xf32>
    %2 = tpu.matmul %0, %1, %cst {dimension_numbers = #tpu.dot_dimension_numbers<[1], [0], [0], [1], [0, 0, 1, 1], [], []>} : vector<8x16xf32>, vector<16x128xf32>, vector<8x128xf32> -> vector<8x128xf32>
    %c0_3 = arith.constant 0 : index
    %c0_4 = arith.constant 0 : index
    %3 = vector.load %arg4[%c0_3, %c0_4] : memref<1x128xf32, #tpu.memory_space<vmem>>, vector<1x128xf32>
    %4 = vector.broadcast %3 : vector<1x128xf32> to vector<8x128xf32>
    %5 = arith.addf %2, %4 : vector<8x128xf32>
    %6 = arith.negf %5 : vector<8x128xf32>
    %7 = math.exp %6 : vector<8x128xf32>
    %cst_5 = arith.constant 1.000000e+00 : f32
    %8 = vector.broadcast %cst_5 : f32 to vector<8x128xf32>
    %9 = arith.addf %8, %7 : vector<8x128xf32>
    %10 = arith.divf %8, %9 : vector<8x128xf32>
    %c0_6 = arith.constant 0 : index
    %c0_7 = arith.constant 0 : index
    %11 = vector.load %arg2[%c0_6, %c0_7] : memref<16x128xf32, #tpu.memory_space<vmem>>, vector<16x128xf32>
    %cst_8 = arith.constant dense<0.000000e+00> : vector<8x128xf32>
    %12 = tpu.matmul %0, %11, %cst_8 {dimension_numbers = #tpu.dot_dimension_numbers<[1], [0], [0], [1], [0, 0, 1, 1], [], []>} : vector<8x16xf32>, vector<16x128xf32>, vector<8x128xf32> -> vector<8x128xf32>
    %c0_9 = arith.constant 0 : index
    %c0_10 = arith.constant 0 : index
    %13 = vector.load %arg5[%c0_9, %c0_10] : memref<1x128xf32, #tpu.memory_space<vmem>>, vector<1x128xf32>
    %14 = vector.broadcast %13 : vector<1x128xf32> to vector<8x128xf32>
    %15 = arith.addf %12, %14 : vector<8x128xf32>
    %16 = math.tanh %15 : vector<8x128xf32>
    %c0_11 = arith.constant 0 : index
    %c0_12 = arith.constant 0 : index
    %17 = vector.load %arg3[%c0_11, %c0_12] : memref<16x128xf32, #tpu.memory_space<vmem>>, vector<16x128xf32>
    %cst_13 = arith.constant dense<0.000000e+00> : vector<8x128xf32>
    %18 = tpu.matmul %0, %17, %cst_13 {dimension_numbers = #tpu.dot_dimension_numbers<[1], [0], [0], [1], [0, 0, 1, 1], [], []>} : vector<8x16xf32>, vector<16x128xf32>, vector<8x128xf32> -> vector<8x128xf32>
    %c0_14 = arith.constant 0 : index
    %c0_15 = arith.constant 0 : index
    %19 = vector.load %arg6[%c0_14, %c0_15] : memref<1x128xf32, #tpu.memory_space<vmem>>, vector<1x128xf32>
    %20 = vector.broadcast %19 : vector<1x128xf32> to vector<8x128xf32>
    %21 = arith.addf %18, %20 : vector<8x128xf32>
    %22 = arith.negf %21 : vector<8x128xf32>
    %23 = math.exp %22 : vector<8x128xf32>
    %cst_16 = arith.constant 1.000000e+00 : f32
    %24 = vector.broadcast %cst_16 : f32 to vector<8x128xf32>
    %25 = arith.addf %24, %23 : vector<8x128xf32>
    %26 = arith.divf %24, %25 : vector<8x128xf32>
    %27 = arith.mulf %10, %16 : vector<8x128xf32>
    %28 = math.tanh %27 : vector<8x128xf32>
    %29 = arith.mulf %26, %28 : vector<8x128xf32>
    %c0_17 = arith.constant 0 : index
    %c0_18 = arith.constant 0 : index
    %30 = vector.load %arg7[%c0_17, %c0_18] : memref<128x128xf32, #tpu.memory_space<vmem>>, vector<128x128xf32>
    %cst_19 = arith.constant dense<0.000000e+00> : vector<8x128xf32>
    %31 = tpu.matmul %29, %30, %cst_19 {dimension_numbers = #tpu.dot_dimension_numbers<[1], [0], [0], [1], [0, 0, 1, 1], [], []>} : vector<8x128xf32>, vector<128x128xf32>, vector<8x128xf32> -> vector<8x128xf32>
    %c0_20 = arith.constant 0 : index
    %c0_21 = arith.constant 0 : index
    %32 = vector.load %arg10[%c0_20, %c0_21] : memref<1x128xf32, #tpu.memory_space<vmem>>, vector<1x128xf32>
    %33 = vector.broadcast %32 : vector<1x128xf32> to vector<8x128xf32>
    %34 = arith.addf %31, %33 : vector<8x128xf32>
    %35 = arith.negf %34 : vector<8x128xf32>
    %36 = math.exp %35 : vector<8x128xf32>
    %cst_22 = arith.constant 1.000000e+00 : f32
    %37 = vector.broadcast %cst_22 : f32 to vector<8x128xf32>
    %38 = arith.addf %37, %36 : vector<8x128xf32>
    %39 = arith.divf %37, %38 : vector<8x128xf32>
    %c0_23 = arith.constant 0 : index
    %c0_24 = arith.constant 0 : index
    %40 = vector.load %arg8[%c0_23, %c0_24] : memref<128x128xf32, #tpu.memory_space<vmem>>, vector<128x128xf32>
    %cst_25 = arith.constant dense<0.000000e+00> : vector<8x128xf32>
    %41 = tpu.matmul %29, %40, %cst_25 {dimension_numbers = #tpu.dot_dimension_numbers<[1], [0], [0], [1], [0, 0, 1, 1], [], []>} : vector<8x128xf32>, vector<128x128xf32>, vector<8x128xf32> -> vector<8x128xf32>
    %c0_26 = arith.constant 0 : index
    %c0_27 = arith.constant 0 : index
    %42 = vector.load %arg11[%c0_26, %c0_27] : memref<1x128xf32, #tpu.memory_space<vmem>>, vector<1x128xf32>
    %43 = vector.broadcast %42 : vector<1x128xf32> to vector<8x128xf32>
    %44 = arith.addf %41, %43 : vector<8x128xf32>
    %45 = math.tanh %44 : vector<8x128xf32>
    %c0_28 = arith.constant 0 : index
    %c0_29 = arith.constant 0 : index
    %46 = vector.load %arg9[%c0_28, %c0_29] : memref<128x128xf32, #tpu.memory_space<vmem>>, vector<128x128xf32>
    %cst_30 = arith.constant dense<0.000000e+00> : vector<8x128xf32>
    %47 = tpu.matmul %29, %46, %cst_30 {dimension_numbers = #tpu.dot_dimension_numbers<[1], [0], [0], [1], [0, 0, 1, 1], [], []>} : vector<8x128xf32>, vector<128x128xf32>, vector<8x128xf32> -> vector<8x128xf32>
    %c0_31 = arith.constant 0 : index
    %c0_32 = arith.constant 0 : index
    %48 = vector.load %arg12[%c0_31, %c0_32] : memref<1x128xf32, #tpu.memory_space<vmem>>, vector<1x128xf32>
    %49 = vector.broadcast %48 : vector<1x128xf32> to vector<8x128xf32>
    %50 = arith.addf %47, %49 : vector<8x128xf32>
    %51 = arith.negf %50 : vector<8x128xf32>
    %52 = math.exp %51 : vector<8x128xf32>
    %cst_33 = arith.constant 1.000000e+00 : f32
    %53 = vector.broadcast %cst_33 : f32 to vector<8x128xf32>
    %54 = arith.addf %53, %52 : vector<8x128xf32>
    %55 = arith.divf %53, %54 : vector<8x128xf32>
    %56 = arith.mulf %39, %45 : vector<8x128xf32>
    %57 = math.tanh %56 : vector<8x128xf32>
    %58 = arith.mulf %55, %57 : vector<8x128xf32>
    %c0_34 = arith.constant 0 : index
    %c0_35 = arith.constant 0 : index
    %59 = vector.load %arg13[%c0_34, %c0_35] : memref<128x64xf32, #tpu.memory_space<vmem>>, vector<128x64xf32>
    %cst_36 = arith.constant dense<0.000000e+00> : vector<8x64xf32>
    %60 = tpu.matmul %58, %59, %cst_36 {dimension_numbers = #tpu.dot_dimension_numbers<[1], [0], [0], [1], [0, 0, 1, 1], [], []>} : vector<8x128xf32>, vector<128x64xf32>, vector<8x64xf32> -> vector<8x64xf32>
    %c0_37 = arith.constant 0 : index
    %c0_38 = arith.constant 0 : index
    %61 = vector.load %arg16[%c0_37, %c0_38] : memref<1x64xf32, #tpu.memory_space<vmem>>, vector<1x64xf32>
    %62 = vector.broadcast %61 : vector<1x64xf32> to vector<8x64xf32>
    %63 = arith.addf %60, %62 : vector<8x64xf32>
    %64 = arith.negf %63 : vector<8x64xf32>
    %65 = math.exp %64 : vector<8x64xf32>
    %cst_39 = arith.constant 1.000000e+00 : f32
    %66 = vector.broadcast %cst_39 : f32 to vector<8x64xf32>
    %67 = arith.addf %66, %65 : vector<8x64xf32>
    %68 = arith.divf %66, %67 : vector<8x64xf32>
    %c0_40 = arith.constant 0 : index
    %c0_41 = arith.constant 0 : index
    %69 = vector.load %arg14[%c0_40, %c0_41] : memref<128x64xf32, #tpu.memory_space<vmem>>, vector<128x64xf32>
    %cst_42 = arith.constant dense<0.000000e+00> : vector<8x64xf32>
    %70 = tpu.matmul %58, %69, %cst_42 {dimension_numbers = #tpu.dot_dimension_numbers<[1], [0], [0], [1], [0, 0, 1, 1], [], []>} : vector<8x128xf32>, vector<128x64xf32>, vector<8x64xf32> -> vector<8x64xf32>
    %c0_43 = arith.constant 0 : index
    %c0_44 = arith.constant 0 : index
    %71 = vector.load %arg17[%c0_43, %c0_44] : memref<1x64xf32, #tpu.memory_space<vmem>>, vector<1x64xf32>
    %72 = vector.broadcast %71 : vector<1x64xf32> to vector<8x64xf32>
    %73 = arith.addf %70, %72 : vector<8x64xf32>
    %74 = math.tanh %73 : vector<8x64xf32>
    %c0_45 = arith.constant 0 : index
    %c0_46 = arith.constant 0 : index
    %75 = vector.load %arg15[%c0_45, %c0_46] : memref<128x64xf32, #tpu.memory_space<vmem>>, vector<128x64xf32>
    %cst_47 = arith.constant dense<0.000000e+00> : vector<8x64xf32>
    %76 = tpu.matmul %58, %75, %cst_47 {dimension_numbers = #tpu.dot_dimension_numbers<[1], [0], [0], [1], [0, 0, 1, 1], [], []>} : vector<8x128xf32>, vector<128x64xf32>, vector<8x64xf32> -> vector<8x64xf32>
    %c0_48 = arith.constant 0 : index
    %c0_49 = arith.constant 0 : index
    %77 = vector.load %arg18[%c0_48, %c0_49] : memref<1x64xf32, #tpu.memory_space<vmem>>, vector<1x64xf32>
    %78 = vector.broadcast %77 : vector<1x64xf32> to vector<8x64xf32>
    %79 = arith.addf %76, %78 : vector<8x64xf32>
    %80 = arith.negf %79 : vector<8x64xf32>
    %81 = math.exp %80 : vector<8x64xf32>
    %cst_50 = arith.constant 1.000000e+00 : f32
    %82 = vector.broadcast %cst_50 : f32 to vector<8x64xf32>
    %83 = arith.addf %82, %81 : vector<8x64xf32>
    %84 = arith.divf %82, %83 : vector<8x64xf32>
    %85 = arith.mulf %68, %74 : vector<8x64xf32>
    %86 = math.tanh %85 : vector<8x64xf32>
    %87 = arith.mulf %84, %86 : vector<8x64xf32>
    %c0_51 = arith.constant 0 : index
    %c0_52 = arith.constant 0 : index
    %88 = vector.load %arg19[%c0_51, %c0_52] : memref<64x32xf32, #tpu.memory_space<vmem>>, vector<64x32xf32>
    %cst_53 = arith.constant dense<0.000000e+00> : vector<8x32xf32>
    %89 = tpu.matmul %87, %88, %cst_53 {dimension_numbers = #tpu.dot_dimension_numbers<[1], [0], [0], [1], [0, 0, 1, 1], [], []>} : vector<8x64xf32>, vector<64x32xf32>, vector<8x32xf32> -> vector<8x32xf32>
    %c0_54 = arith.constant 0 : index
    %c0_55 = arith.constant 0 : index
    %90 = vector.load %arg22[%c0_54, %c0_55] : memref<1x32xf32, #tpu.memory_space<vmem>>, vector<1x32xf32>
    %91 = vector.broadcast %90 : vector<1x32xf32> to vector<8x32xf32>
    %92 = arith.addf %89, %91 : vector<8x32xf32>
    %93 = arith.negf %92 : vector<8x32xf32>
    %94 = math.exp %93 : vector<8x32xf32>
    %cst_56 = arith.constant 1.000000e+00 : f32
    %95 = vector.broadcast %cst_56 : f32 to vector<8x32xf32>
    %96 = arith.addf %95, %94 : vector<8x32xf32>
    %97 = arith.divf %95, %96 : vector<8x32xf32>
    %c0_57 = arith.constant 0 : index
    %c0_58 = arith.constant 0 : index
    %98 = vector.load %arg20[%c0_57, %c0_58] : memref<64x32xf32, #tpu.memory_space<vmem>>, vector<64x32xf32>
    %cst_59 = arith.constant dense<0.000000e+00> : vector<8x32xf32>
    %99 = tpu.matmul %87, %98, %cst_59 {dimension_numbers = #tpu.dot_dimension_numbers<[1], [0], [0], [1], [0, 0, 1, 1], [], []>} : vector<8x64xf32>, vector<64x32xf32>, vector<8x32xf32> -> vector<8x32xf32>
    %c0_60 = arith.constant 0 : index
    %c0_61 = arith.constant 0 : index
    %100 = vector.load %arg23[%c0_60, %c0_61] : memref<1x32xf32, #tpu.memory_space<vmem>>, vector<1x32xf32>
    %101 = vector.broadcast %100 : vector<1x32xf32> to vector<8x32xf32>
    %102 = arith.addf %99, %101 : vector<8x32xf32>
    %103 = math.tanh %102 : vector<8x32xf32>
    %c0_62 = arith.constant 0 : index
    %c0_63 = arith.constant 0 : index
    %104 = vector.load %arg21[%c0_62, %c0_63] : memref<64x32xf32, #tpu.memory_space<vmem>>, vector<64x32xf32>
    %cst_64 = arith.constant dense<0.000000e+00> : vector<8x32xf32>
    %105 = tpu.matmul %87, %104, %cst_64 {dimension_numbers = #tpu.dot_dimension_numbers<[1], [0], [0], [1], [0, 0, 1, 1], [], []>} : vector<8x64xf32>, vector<64x32xf32>, vector<8x32xf32> -> vector<8x32xf32>
    %c0_65 = arith.constant 0 : index
    %c0_66 = arith.constant 0 : index
    %106 = vector.load %arg24[%c0_65, %c0_66] : memref<1x32xf32, #tpu.memory_space<vmem>>, vector<1x32xf32>
    %107 = vector.broadcast %106 : vector<1x32xf32> to vector<8x32xf32>
    %108 = arith.addf %105, %107 : vector<8x32xf32>
    %109 = arith.negf %108 : vector<8x32xf32>
    %110 = math.exp %109 : vector<8x32xf32>
    %cst_67 = arith.constant 1.000000e+00 : f32
    %111 = vector.broadcast %cst_67 : f32 to vector<8x32xf32>
    %112 = arith.addf %111, %110 : vector<8x32xf32>
    %113 = arith.divf %111, %112 : vector<8x32xf32>
    %114 = arith.mulf %97, %103 : vector<8x32xf32>
    %115 = math.tanh %114 : vector<8x32xf32>
    %116 = arith.mulf %113, %115 : vector<8x32xf32>
    %c0_68 = arith.constant 0 : index
    %c0_69 = arith.constant 0 : index
    %117 = vector.load %arg25[%c0_68, %c0_69] : memref<32x32xf32, #tpu.memory_space<vmem>>, vector<32x32xf32>
    %cst_70 = arith.constant dense<0.000000e+00> : vector<8x32xf32>
    %118 = tpu.matmul %116, %117, %cst_70 {dimension_numbers = #tpu.dot_dimension_numbers<[1], [0], [0], [1], [0, 0, 1, 1], [], []>} : vector<8x32xf32>, vector<32x32xf32>, vector<8x32xf32> -> vector<8x32xf32>
    %c0_71 = arith.constant 0 : index
    %c0_72 = arith.constant 0 : index
    %119 = vector.load %arg28[%c0_71, %c0_72] : memref<1x32xf32, #tpu.memory_space<vmem>>, vector<1x32xf32>
    %120 = vector.broadcast %119 : vector<1x32xf32> to vector<8x32xf32>
    %121 = arith.addf %118, %120 : vector<8x32xf32>
    %122 = arith.negf %121 : vector<8x32xf32>
    %123 = math.exp %122 : vector<8x32xf32>
    %cst_73 = arith.constant 1.000000e+00 : f32
    %124 = vector.broadcast %cst_73 : f32 to vector<8x32xf32>
    %125 = arith.addf %124, %123 : vector<8x32xf32>
    %126 = arith.divf %124, %125 : vector<8x32xf32>
    %c0_74 = arith.constant 0 : index
    %c0_75 = arith.constant 0 : index
    %127 = vector.load %arg26[%c0_74, %c0_75] : memref<32x32xf32, #tpu.memory_space<vmem>>, vector<32x32xf32>
    %cst_76 = arith.constant dense<0.000000e+00> : vector<8x32xf32>
    %128 = tpu.matmul %116, %127, %cst_76 {dimension_numbers = #tpu.dot_dimension_numbers<[1], [0], [0], [1], [0, 0, 1, 1], [], []>} : vector<8x32xf32>, vector<32x32xf32>, vector<8x32xf32> -> vector<8x32xf32>
    %c0_77 = arith.constant 0 : index
    %c0_78 = arith.constant 0 : index
    %129 = vector.load %arg29[%c0_77, %c0_78] : memref<1x32xf32, #tpu.memory_space<vmem>>, vector<1x32xf32>
    %130 = vector.broadcast %129 : vector<1x32xf32> to vector<8x32xf32>
    %131 = arith.addf %128, %130 : vector<8x32xf32>
    %132 = math.tanh %131 : vector<8x32xf32>
    %c0_79 = arith.constant 0 : index
    %c0_80 = arith.constant 0 : index
    %133 = vector.load %arg27[%c0_79, %c0_80] : memref<32x32xf32, #tpu.memory_space<vmem>>, vector<32x32xf32>
    %cst_81 = arith.constant dense<0.000000e+00> : vector<8x32xf32>
    %134 = tpu.matmul %116, %133, %cst_81 {dimension_numbers = #tpu.dot_dimension_numbers<[1], [0], [0], [1], [0, 0, 1, 1], [], []>} : vector<8x32xf32>, vector<32x32xf32>, vector<8x32xf32> -> vector<8x32xf32>
    %c0_82 = arith.constant 0 : index
    %c0_83 = arith.constant 0 : index
    %135 = vector.load %arg30[%c0_82, %c0_83] : memref<1x32xf32, #tpu.memory_space<vmem>>, vector<1x32xf32>
    %136 = vector.broadcast %135 : vector<1x32xf32> to vector<8x32xf32>
    %137 = arith.addf %134, %136 : vector<8x32xf32>
    %138 = arith.negf %137 : vector<8x32xf32>
    %139 = math.exp %138 : vector<8x32xf32>
    %cst_84 = arith.constant 1.000000e+00 : f32
    %140 = vector.broadcast %cst_84 : f32 to vector<8x32xf32>
    %141 = arith.addf %140, %139 : vector<8x32xf32>
    %142 = arith.divf %140, %141 : vector<8x32xf32>
    %143 = arith.mulf %126, %132 : vector<8x32xf32>
    %144 = math.tanh %143 : vector<8x32xf32>
    %145 = arith.mulf %142, %144 : vector<8x32xf32>
    %c0_85 = arith.constant 0 : index
    %c0_86 = arith.constant 0 : index
    %146 = vector.load %arg31[%c0_85, %c0_86] : memref<1x32xf32, #tpu.memory_space<vmem>>, vector<1x32xf32>
    %147 = vector.broadcast %146 : vector<1x32xf32> to vector<8x32xf32>
    %148 = arith.mulf %145, %147 : vector<8x32xf32>
    %cst_87 = arith.constant dense<0.000000e+00> : vector<8xf32>
    %149 = vector.multi_reduction <add>, %148, %cst_87 [1] : vector<8x32xf32> to vector<8xf32>
    %150 = vector.shape_cast %149 : vector<8xf32> to vector<8x1xf32>
    %c0_88 = arith.constant 0 : index
    %c0_89 = arith.constant 0 : index
    %151 = vector.load %arg32[%c0_88, %c0_89] : memref<1x1xf32, #tpu.memory_space<vmem>>, vector<1x1xf32>
    %152 = vector.broadcast %151 : vector<1x1xf32> to vector<8x1xf32>
    %153 = arith.addf %150, %152 : vector<8x1xf32>
    %154 = arith.negf %153 : vector<8x1xf32>
    %155 = math.exp %154 : vector<8x1xf32>
    %cst_90 = arith.constant 1.000000e+00 : f32
    %156 = vector.broadcast %cst_90 : f32 to vector<8x1xf32>
    %157 = arith.addf %156, %155 : vector<8x1xf32>
    %158 = arith.divf %156, %157 : vector<8x1xf32>
    %c0_91 = arith.constant 0 : index
    %c0_92 = arith.constant 0 : index
    %159 = vector.load %arg33[%c0_91, %c0_92] : memref<8x1xf32, #tpu.memory_space<vmem>>, vector<8x1xf32>
    tpu.vector_store %arg33[%c0_91, %c0_92], %158 {strides = array<i32>} : memref<8x1xf32, #tpu.memory_space<vmem>>, vector<8x1xf32>,
    return
  }
}

</mosaic_0001>

<llo_original>
// kernel: lstm_model_forward.1
$region0: #{lstm_model_forward.1}
  #allocation0 [shape = 'u32[]', space=smem, size = 0x4, offset = 0x4, fixed_abs, tag = 'smem constant byte address 0x4 - core index']
  #allocation1 [shape = 'u32[144,128]{1,0:T(1,128)}', space=vmem, size = 0x12000, scoped, tag = 'internal scratch']
  #allocation2 [shape = 'f32[1,1]{1,0:T(1,128)S(1)}', space=vmem, size = 0x200, scoped, tag = 'scoped memory for lstm_model_forward.1']
  %s0 = inlined_call_operand.smem [shape: u32[34], index: -1, kind: input, shape index: {}]
  %s1 = sld [smem:[%s0]]
  %s2 = scalar_lea.smem %s0, 1
  %s3 = sld [smem:[%s2]]
  %s4 = scalar_lea.smem %s0, 2
  %s5 = sld [smem:[%s4]]
  %s6 = scalar_lea.smem %s0, 3
  %s7 = sld [smem:[%s6]]
  %s8 = scalar_lea.smem %s0, 4
  %s9 = sld [smem:[%s8]]
  %s10 = scalar_lea.smem %s0, 5
  %s11 = sld [smem:[%s10]]
  %s12 = scalar_lea.smem %s0, 6
  %s13 = sld [smem:[%s12]]
  %s14 = scalar_lea.smem %s0, 7
  %s15 = sld [smem:[%s14]]
  %s16 = scalar_lea.smem %s0, 8
  %s17 = sld [smem:[%s16]]
  %s18 = scalar_lea.smem %s0, 9
  %s19 = sld [smem:[%s18]]
  %s20 = scalar_lea.smem %s0, 10
  %s21 = sld [smem:[%s20]]
  %s22 = scalar_lea.smem %s0, 11
  %s23 = sld [smem:[%s22]]
  %s24 = scalar_lea.smem %s0, 12
  %s25 = sld [smem:[%s24]]
  %s26 = scalar_lea.smem %s0, 13
  %s27 = sld [smem:[%s26]]
  %s28 = scalar_lea.smem %s0, 14
  %s29 = sld [smem:[%s28]]
  %s30 = scalar_lea.smem %s0, 15
  %s31 = sld [smem:[%s30]]
  %s32 = scalar_lea.smem %s0, 16
  %s33 = sld [smem:[%s32]]
  %s34 = scalar_lea.smem %s0, 17
  %s35 = sld [smem:[%s34]]
  %s36 = scalar_lea.smem %s0, 18
  %s37 = sld [smem:[%s36]]
  %s38 = scalar_lea.smem %s0, 19
  %s39 = sld [smem:[%s38]]
  %s40 = scalar_lea.smem %s0, 20
  %s41 = sld [smem:[%s40]]
  %s42 = scalar_lea.smem %s0, 21
  %s43 = sld [smem:[%s42]]
  %s44 = scalar_lea.smem %s0, 22
  %s45 = sld [smem:[%s44]]
  %s46 = scalar_lea.smem %s0, 23
  %s47 = sld [smem:[%s46]]
  %s48 = scalar_lea.smem %s0, 24
  %s49 = sld [smem:[%s48]]
  %s50 = scalar_lea.smem %s0, 25
  %s51 = sld [smem:[%s50]]
  %s52 = scalar_lea.smem %s0, 26
  %s53 = sld [smem:[%s52]]
  %s54 = scalar_lea.smem %s0, 27
  %s55 = sld [smem:[%s54]]
  %s56 = scalar_lea.smem %s0, 28
  %s57 = sld [smem:[%s56]]
  %s58 = scalar_lea.smem %s0, 29
  %s59 = sld [smem:[%s58]]
  %s60 = scalar_lea.smem %s0, 30
  %s61 = sld [smem:[%s60]]
  %s62 = scalar_lea.smem %s0, 31
  %s63 = sld [smem:[%s62]]
  %s64 = scalar_lea.smem %s0, 32
  %s65 = sld [smem:[%s64]]
  %s66 = scalar_lea.smem %s0, 33
  %s67 = sld [smem:[%s66]]
  %s68 = sld [smem:[#allocation0]]
  $region142: #{lstm_model_forward.1} parent=0
    _
  %s70 = ssub.s32 1, %s68
  %s71 = scalar_select 0, %s70, %s68
  %v72 = vstv %s65
  %73 = vst [vmem:[#allocation2] sm:$0x1] %v72
  // Predicated region
  $region2: #{lstm_model_forward.1} parent=0 // pred_check
    _
  $region3: #{lstm_model_forward.1} parent=0 // pred_check_branch
    %75 = sbr.rel (0) target = $region5
  $region4: #{lstm_model_forward.1} parent=0 // pred_region
    _
  $region5: #{lstm_model_forward.1} parent=0 // pred_fallthru
    _
  // Predicated region
  $region6: #{lstm_model_forward.1} parent=0 // pred_check
    _
  $region7: #{lstm_model_forward.1} parent=0 // pred_check_branch
    %77 = sbr.rel (0) target = $region9
  $region8: #{lstm_model_forward.1} parent=0 // pred_region
    _
  $region9: #{lstm_model_forward.1} parent=0 // pred_fallthru
    _
  // Predicated region
  $region10: #{lstm_model_forward.1} parent=0 // pred_check
    _
  $region11: #{lstm_model_forward.1} parent=0 // pred_check_branch
    %79 = sbr.rel (0) target = $region13
  $region12: #{lstm_model_forward.1} parent=0 // pred_region
    _
  $region13: #{lstm_model_forward.1} parent=0 // pred_fallthru
    _
  // Predicated region
  $region14: #{lstm_model_forward.1} parent=0 // pred_check
    _
  $region15: #{lstm_model_forward.1} parent=0 // pred_check_branch
    %81 = sbr.rel (0) target = $region17
  $region16: #{lstm_model_forward.1} parent=0 // pred_region
    _
  $region17: #{lstm_model_forward.1} parent=0 // pred_fallthru
    _
  // Predicated region
  $region18: #{lstm_model_forward.1} parent=0 // pred_check
    _
  $region19: #{lstm_model_forward.1} parent=0 // pred_check_branch
    %83 = sbr.rel (0) target = $region21
  $region20: #{lstm_model_forward.1} parent=0 // pred_region
    _
  $region21: #{lstm_model_forward.1} parent=0 // pred_fallthru
    _
  // Predicated region
  $region22: #{lstm_model_forward.1} parent=0 // pred_check
    _
  $region23: #{lstm_model_forward.1} parent=0 // pred_check_branch
    %85 = sbr.rel (0) target = $region25
  $region24: #{lstm_model_forward.1} parent=0 // pred_region
    _
  $region25: #{lstm_model_forward.1} parent=0 // pred_fallthru
    _
  // Predicated region
  $region26: #{lstm_model_forward.1} parent=0 // pred_check
    _
  $region27: #{lstm_model_forward.1} parent=0 // pred_check_branch
    %87 = sbr.rel (0) target = $region29
  $region28: #{lstm_model_forward.1} parent=0 // pred_region
    _
  $region29: #{lstm_model_forward.1} parent=0 // pred_fallthru
    _
  // Predicated region
  $region30: #{lstm_model_forward.1} parent=0 // pred_check
    _
  $region31: #{lstm_model_forward.1} parent=0 // pred_check_branch
    %89 = sbr.rel (0) target = $region33
  $region32: #{lstm_model_forward.1} parent=0 // pred_region
    _
  $region33: #{lstm_model_forward.1} parent=0 // pred_fallthru
    _
  // Predicated region
  $region34: #{lstm_model_forward.1} parent=0 // pred_check
    _
  $region35: #{lstm_model_forward.1} parent=0 // pred_check_branch
    %91 = sbr.rel (0) target = $region37
  $region36: #{lstm_model_forward.1} parent=0 // pred_region
    _
  $region37: #{lstm_model_forward.1} parent=0 // pred_fallthru
    _
  // Predicated region
  $region38: #{lstm_model_forward.1} parent=0 // pred_check
    _
  $region39: #{lstm_model_forward.1} parent=0 // pred_check_branch
    %93 = sbr.rel (0) target = $region41
  $region40: #{lstm_model_forward.1} parent=0 // pred_region
    _
  $region41: #{lstm_model_forward.1} parent=0 // pred_fallthru
    _
  // Predicated region
  $region42: #{lstm_model_forward.1} parent=0 // pred_check
    _
  $region43: #{lstm_model_forward.1} parent=0 // pred_check_branch
    %95 = sbr.rel (0) target = $region45
  $region44: #{lstm_model_forward.1} parent=0 // pred_region
    _
  $region45: #{lstm_model_forward.1} parent=0 // pred_fallthru
    _
  // Predicated region
  $region46: #{lstm_model_forward.1} parent=0 // pred_check
    _
  $region47: #{lstm_model_forward.1} parent=0 // pred_check_branch
    %97 = sbr.rel (0) target = $region49
  $region48: #{lstm_model_forward.1} parent=0 // pred_region
    _
  $region49: #{lstm_model_forward.1} parent=0 // pred_fallthru
    _
  // Predicated region
  $region50: #{lstm_model_forward.1} parent=0 // pred_check
    _
  $region51: #{lstm_model_forward.1} parent=0 // pred_check_branch
    %99 = sbr.rel (0) target = $region53
  $region52: #{lstm_model_forward.1} parent=0 // pred_region
    _
  $region53: #{lstm_model_forward.1} parent=0 // pred_fallthru
    _
  // Predicated region
  $region54: #{lstm_model_forward.1} parent=0 // pred_check
    _
  $region55: #{lstm_model_forward.1} parent=0 // pred_check_branch
    %101 = sbr.rel (0) target = $region57
  $region56: #{lstm_model_forward.1} parent=0 // pred_region
    _
  $region57: #{lstm_model_forward.1} parent=0 // pred_fallthru
    _
  // Predicated region
  $region58: #{lstm_model_forward.1} parent=0 // pred_check
    _
  $region59: #{lstm_model_forward.1} parent=0 // pred_check_branch
    %103 = sbr.rel (0) target = $region61
  $region60: #{lstm_model_forward.1} parent=0 // pred_region
    _
  $region61: #{lstm_model_forward.1} parent=0 // pred_fallthru
    _
  // Predicated region
  $region62: #{lstm_model_forward.1} parent=0 // pred_check
    _
  $region63: #{lstm_model_forward.1} parent=0 // pred_check_branch
    %105 = sbr.rel (0) target = $region65
  $region64: #{lstm_model_forward.1} parent=0 // pred_region
    _
  $region65: #{lstm_model_forward.1} parent=0 // pred_fallthru
    _
  // Predicated region
  $region66: #{lstm_model_forward.1} parent=0 // pred_check
    _
  $region67: #{lstm_model_forward.1} parent=0 // pred_check_branch
    %107 = sbr.rel (0) target = $region69
  $region68: #{lstm_model_forward.1} parent=0 // pred_region
    _
  $region69: #{lstm_model_forward.1} parent=0 // pred_fallthru
    _
  // Predicated region
  $region70: #{lstm_model_forward.1} parent=0 // pred_check
    _
  $region71: #{lstm_model_forward.1} parent=0 // pred_check_branch
    %109 = sbr.rel (0) target = $region73
  $region72: #{lstm_model_forward.1} parent=0 // pred_region
    _
  $region73: #{lstm_model_forward.1} parent=0 // pred_fallthru
    _
  // Predicated region
  $region74: #{lstm_model_forward.1} parent=0 // pred_check
    _
  $region75: #{lstm_model_forward.1} parent=0 // pred_check_branch
    %111 = sbr.rel (0) target = $region77
  $region76: #{lstm_model_forward.1} parent=0 // pred_region
    _
  $region77: #{lstm_model_forward.1} parent=0 // pred_fallthru
    _
  // Predicated region
  $region78: #{lstm_model_forward.1} parent=0 // pred_check
    _
  $region79: #{lstm_model_forward.1} parent=0 // pred_check_branch
    %113 = sbr.rel (0) target = $region81
  $region80: #{lstm_model_forward.1} parent=0 // pred_region
    _
  $region81: #{lstm_model_forward.1} parent=0 // pred_fallthru
    _
  // Predicated region
  $region82: #{lstm_model_forward.1} parent=0 // pred_check
    _
  $region83: #{lstm_model_forward.1} parent=0 // pred_check_branch
    %115 = sbr.rel (0) target = $region85
  $region84: #{lstm_model_forward.1} parent=0 // pred_region
    _
  $region85: #{lstm_model_forward.1} parent=0 // pred_fallthru
    _
  // Predicated region
  $region86: #{lstm_model_forward.1} parent=0 // pred_check
    _
  $region87: #{lstm_model_forward.1} parent=0 // pred_check_branch
    %117 = sbr.rel (0) target = $region89
  $region88: #{lstm_model_forward.1} parent=0 // pred_region
    _
  $region89: #{lstm_model_forward.1} parent=0 // pred_fallthru
    _
  // Predicated region
  $region90: #{lstm_model_forward.1} parent=0 // pred_check
    _
  $region91: #{lstm_model_forward.1} parent=0 // pred_check_branch
    %119 = sbr.rel (0) target = $region93
  $region92: #{lstm_model_forward.1} parent=0 // pred_region
    _
  $region93: #{lstm_model_forward.1} parent=0 // pred_fallthru
    _
  // Predicated region
  $region94: #{lstm_model_forward.1} parent=0 // pred_check
    _
  $region95: #{lstm_model_forward.1} parent=0 // pred_check_branch
    %121 = sbr.rel (0) target = $region97
  $region96: #{lstm_model_forward.1} parent=0 // pred_region
    _
  $region97: #{lstm_model_forward.1} parent=0 // pred_fallthru
    _
  // Predicated region
  $region98: #{lstm_model_forward.1} parent=0 // pred_check
    _
  $region99: #{lstm_model_forward.1} parent=0 // pred_check_branch
    %123 = sbr.rel (0) target = $region101
  $region100: #{lstm_model_forward.1} parent=0 // pred_region
    _
  $region101: #{lstm_model_forward.1} parent=0 // pred_fallthru
    _
  // Predicated region
  $region102: #{lstm_model_forward.1} parent=0 // pred_check
    _
  $region103: #{lstm_model_forward.1} parent=0 // pred_check_branch
    %125 = sbr.rel (0) target = $region105
  $region104: #{lstm_model_forward.1} parent=0 // pred_region
    _
  $region105: #{lstm_model_forward.1} parent=0 // pred_fallthru
    _
  // Predicated region
  $region106: #{lstm_model_forward.1} parent=0 // pred_check
    _
  $region107: #{lstm_model_forward.1} parent=0 // pred_check_branch
    %127 = sbr.rel (0) target = $region109
  $region108: #{lstm_model_forward.1} parent=0 // pred_region
    _
  $region109: #{lstm_model_forward.1} parent=0 // pred_fallthru
    _
  // Predicated region
  $region110: #{lstm_model_forward.1} parent=0 // pred_check
    _
  $region111: #{lstm_model_forward.1} parent=0 // pred_check_branch
    %129 = sbr.rel (0) target = $region113
  $region112: #{lstm_model_forward.1} parent=0 // pred_region
    _
  $region113: #{lstm_model_forward.1} parent=0 // pred_fallthru
    _
  // Predicated region
  $region114: #{lstm_model_forward.1} parent=0 // pred_check
    _
  $region115: #{lstm_model_forward.1} parent=0 // pred_check_branch
    %131 = sbr.rel (0) target = $region117
  $region116: #{lstm_model_forward.1} parent=0 // pred_region
    _
  $region117: #{lstm_model_forward.1} parent=0 // pred_fallthru
    _
  // Predicated region
  $region118: #{lstm_model_forward.1} parent=0 // pred_check
    _
  $region119: #{lstm_model_forward.1} parent=0 // pred_check_branch
    %133 = sbr.rel (0) target = $region121
  $region120: #{lstm_model_forward.1} parent=0 // pred_region
    _
  $region121: #{lstm_model_forward.1} parent=0 // pred_fallthru
    _
  // Predicated region
  $region122: #{lstm_model_forward.1} parent=0 // pred_check
    _
  $region123: #{lstm_model_forward.1} parent=0 // pred_check_branch
    %135 = sbr.rel (0) target = $region125
  $region124: #{lstm_model_forward.1} parent=0 // pred_region
    _
  $region125: #{lstm_model_forward.1} parent=0 // pred_fallthru
    _
  // Predicated region
  $region126: #{lstm_model_forward.1} parent=0 // pred_check
    _
  $region127: #{lstm_model_forward.1} parent=0 // pred_check_branch
    %137 = sbr.rel (0) target = $region129
  $region128: #{lstm_model_forward.1} parent=0 // pred_region
    _
  $region129: #{lstm_model_forward.1} parent=0 // pred_fallthru
    _
  // Predicated region
  $region130: #{lstm_model_forward.1} parent=0 // pred_check
    _
  $region131: #{lstm_model_forward.1} parent=0 // pred_check_branch
    %139 = sbr.rel (0) target = $region133
  $region132: #{lstm_model_forward.1} parent=0 // pred_region
    _
  $region133: #{lstm_model_forward.1} parent=0 // pred_fallthru
    _
  %v140 = vld [vmem:[%s1] sm:$0xff]
  %v141 = vld [vmem:[%s3] sm:$0xff]
  %v142 = vld [vmem:[%s3 + $0x8] sm:$0xff]
  %v143 = vld [vmem:[%s9] sm:$0x1]
  %v145 = vlaneseq
  %v146 = vshrl.u32 %v145, 7
  %v147 = vsub.s32 0, %v146
  %v148 = vrot.slane %v143, %v147
  %vm150 = vcmask 130048
  %v152 = vsel %vm150, %v140, 0
  %154 = vmatprep.subr.mxu0 0.0
  %155 = vmatpush1.msra.mxu0 %v141
  %156 = vmatprep.subr.mxu0 0.0
  %157 = vmatpush1.msra.mxu0 %v142
  %158 = vmatprep.subr.mxu0 0.0
  %159 = vmatpush1.msra.mxu0 0.0
  %160 = vmatprep.subr.mxu0 0.0
  %161 = vmatpush1.msra.mxu0 0.0
  %162 = vmatprep.subr.mxu0 0.0
  %163 = vmatpush1.msra.mxu0 0.0
  %164 = vmatprep.subr.mxu0 0.0
  %165 = vmatpush1.msra.mxu0 0.0
  %166 = vmatprep.subr.mxu0 0.0
  %167 = vmatpush1.msra.mxu0 0.0
  %168 = vmatprep.subr.mxu0 0.0
  %169 = vmatpush1.msra.mxu0 0.0
  %170 = vmatprep.subr.mxu0 0.0
  %171 = vmatpush1.msra.mxu0 0.0
  %172 = vmatprep.subr.mxu0 0.0
  %173 = vmatpush1.msra.mxu0 0.0
  %174 = vmatprep.subr.mxu0 0.0
  %175 = vmatpush1.msra.mxu0 0.0
  %176 = vmatprep.subr.mxu0 0.0
  %177 = vmatpush1.msra.mxu0 0.0
  %178 = vmatprep.subr.mxu0 0.0
  %179 = vmatpush1.msra.mxu0 0.0
  %180 = vmatprep.subr.mxu0 0.0
  %181 = vmatpush1.msra.mxu0 0.0
  %182 = vmatprep.subr.mxu0 0.0
  %183 = vmatpush1.msra.mxu0 0.0
  %184 = vmatprep.subr.mxu0 0.0
  %185 = vmatpush1.msra.mxu0 0.0
  %186 = vmatprep.subr.mxu0 0.0
  %187 = vmatpush1.msra.mxu0 0.0
  %188 = vmatprep.subr.mxu0 0.0
  %189 = vmatpush1.msra.mxu0 0.0
  %190 = vmatprep.subr.mxu0 0.0
  %191 = vmatpush1.msra.mxu0 0.0
  %192 = vmatprep.subr.mxu0 0.0
  %193 = vmatpush1.msra.mxu0 0.0
  %194 = vmatprep.subr.mxu0 0.0
  %195 = vmatpush1.msra.mxu0 0.0
  %196 = vmatprep.subr.mxu0 0.0
  %197 = vmatpush1.msra.mxu0 0.0
  %198 = vmatprep.subr.mxu0 0.0
  %199 = vmatpush1.msra.mxu0 0.0
  %200 = vmatprep.subr.mxu0 0.0
  %201 = vmatpush1.msra.mxu0 0.0
  %202 = vmatprep.subr.mxu0 0.0
  %203 = vmatpush1.msra.mxu0 0.0
  %204 = vmatprep.subr.mxu0 0.0
  %205 = vmatpush1.msra.mxu0 0.0
  %206 = vmatprep.subr.mxu0 0.0
  %207 = vmatpush1.msra.mxu0 0.0
  %208 = vmatprep.subr.mxu0 0.0
  %209 = vmatpush1.msra.mxu0 0.0
  %210 = vmatprep.subr.mxu0 0.0
  %211 = vmatpush1.msra.mxu0 0.0
  %212 = vmatprep.subr.mxu0 0.0
  %213 = vmatpush1.msra.mxu0 0.0
  %214 = vmatprep.subr.mxu0 0.0
  %215 = vmatpush1.msra.mxu0 0.0
  %216 = vmatprep.subr.mxu0 0.0
  %217 = vmatpush1.msra.mxu0 0.0
  %218 = vmatprep.mubr.f32.mxu0 0.0
  %219 = vmatmul.mubr.f32.gmra.mrb[0].mxu0 %v152
  %v220 = vpop.f32.mrb[0].mxu0
  %v221 = vadd.f32 %v148, %v220
  %v222 = vpop.f32.mrb[0].mxu0
  %223 = vdwg.mxu0
  %v224 = vxor.u32 %v221, 2147483648
  %v225 = vmul.f32 %v224, 1.442695
  %v226 = vpow.pop %v225
  %v227 = vadd.f32 %v226, 1.0
  %v228 = vrcp.pop %v227
  %v229 = vmul.f32 1.0, %v228
  %v230 = vld [vmem:[%s5] sm:$0xff]
  %v231 = vld [vmem:[%s5 + $0x8] sm:$0xff]
  %v232 = vld [vmem:[%s11] sm:$0x1]
  %v234 = vlaneseq
  %v235 = vshrl.u32 %v234, 7
  %v236 = vsub.s32 0, %v235
  %v237 = vrot.slane %v232, %v236
  %239 = vmatprep.subr.mxu0 0.0
  %240 = vmatpush1.msra.mxu0 %v230
  %241 = vmatprep.subr.mxu0 0.0
  %242 = vmatpush1.msra.mxu0 %v231
  %243 = vmatprep.subr.mxu0 0.0
  %244 = vmatpush1.msra.mxu0 0.0
  %245 = vmatprep.subr.mxu0 0.0
  %246 = vmatpush1.msra.mxu0 0.0
  %247 = vmatprep.subr.mxu0 0.0
  %248 = vmatpush1.msra.mxu0 0.0
  %249 = vmatprep.subr.mxu0 0.0
  %250 = vmatpush1.msra.mxu0 0.0
  %251 = vmatprep.subr.mxu0 0.0
  %252 = vmatpush1.msra.mxu0 0.0
  %253 = vmatprep.subr.mxu0 0.0
  %254 = vmatpush1.msra.mxu0 0.0
  %255 = vmatprep.subr.mxu0 0.0
  %256 = vmatpush1.msra.mxu0 0.0
  %257 = vmatprep.subr.mxu0 0.0
  %258 = vmatpush1.msra.mxu0 0.0
  %259 = vmatprep.subr.mxu0 0.0
  %260 = vmatpush1.msra.mxu0 0.0
  %261 = vmatprep.subr.mxu0 0.0
  %262 = vmatpush1.msra.mxu0 0.0
  %263 = vmatprep.subr.mxu0 0.0
  %264 = vmatpush1.msra.mxu0 0.0
  %265 = vmatprep.subr.mxu0 0.0
  %266 = vmatpush1.msra.mxu0 0.0
  %267 = vmatprep.subr.mxu0 0.0
  %268 = vmatpush1.msra.mxu0 0.0
  %269 = vmatprep.subr.mxu0 0.0
  %270 = vmatpush1.msra.mxu0 0.0
  %271 = vmatprep.subr.mxu0 0.0
  %272 = vmatpush1.msra.mxu0 0.0
  %273 = vmatprep.subr.mxu0 0.0
  %274 = vmatpush1.msra.mxu0 0.0
  %275 = vmatprep.subr.mxu0 0.0
  %276 = vmatpush1.msra.mxu0 0.0
  %277 = vmatprep.subr.mxu0 0.0
  %278 = vmatpush1.msra.mxu0 0.0
  %279 = vmatprep.subr.mxu0 0.0
  %280 = vmatpush1.msra.mxu0 0.0
  %281 = vmatprep.subr.mxu0 0.0
  %282 = vmatpush1.msra.mxu0 0.0
  %283 = vmatprep.subr.mxu0 0.0
  %284 = vmatpush1.msra.mxu0 0.0
  %285 = vmatprep.subr.mxu0 0.0
  %286 = vmatpush1.msra.mxu0 0.0
  %287 = vmatprep.subr.mxu0 0.0
  %288 = vmatpush1.msra.mxu0 0.0
  %289 = vmatprep.subr.mxu0 0.0
  %290 = vmatpush1.msra.mxu0 0.0
  %291 = vmatprep.subr.mxu0 0.0
  %292 = vmatpush1.msra.mxu0 0.0
  %293 = vmatprep.subr.mxu0 0.0
  %294 = vmatpush1.msra.mxu0 0.0
  %295 = vmatprep.subr.mxu0 0.0
  %296 = vmatpush1.msra.mxu0 0.0
  %297 = vmatprep.subr.mxu0 0.0
  %298 = vmatpush1.msra.mxu0 0.0
  %299 = vmatprep.subr.mxu0 0.0
  %300 = vmatpush1.msra.mxu0 0.0
  %301 = vmatprep.subr.mxu0 0.0
  %302 = vmatpush1.msra.mxu0 0.0
  %303 = vmatprep.mubr.f32.mxu0 0.0
  %304 = vmatmul.mubr.f32.gmra.mrb[0].mxu0 %v152
  %v305 = vpop.f32.mrb[0].mxu0
  %v306 = vadd.f32 %v237, %v305
  %v307 = vpop.f32.mrb[0].mxu0
  %308 = vdwg.mxu0
  %v309 = vtanh.pop %v306
  %v310 = vld [vmem:[%s7] sm:$0xff]
  %v311 = vld [vmem:[%s7 + $0x8] sm:$0xff]
  %v312 = vld [vmem:[%s13] sm:$0x1]
  %v314 = vlaneseq
  %v315 = vshrl.u32 %v314, 7
  %v316 = vsub.s32 0, %v315
  %v317 = vrot.slane %v312, %v316
  %319 = vmatprep.subr.mxu0 0.0
  %320 = vmatpush1.msra.mxu0 %v310
  %321 = vmatprep.subr.mxu0 0.0
  %322 = vmatpush1.msra.mxu0 %v311
  %323 = vmatprep.subr.mxu0 0.0
  %324 = vmatpush1.msra.mxu0 0.0
  %325 = vmatprep.subr.mxu0 0.0
  %326 = vmatpush1.msra.mxu0 0.0
  %327 = vmatprep.subr.mxu0 0.0
  %328 = vmatpush1.msra.mxu0 0.0
  %329 = vmatprep.subr.mxu0 0.0
  %330 = vmatpush1.msra.mxu0 0.0
  %331 = vmatprep.subr.mxu0 0.0
  %332 = vmatpush1.msra.mxu0 0.0
  %333 = vmatprep.subr.mxu0 0.0
  %334 = vmatpush1.msra.mxu0 0.0
  %335 = vmatprep.subr.mxu0 0.0
  %336 = vmatpush1.msra.mxu0 0.0
  %337 = vmatprep.subr.mxu0 0.0
  %338 = vmatpush1.msra.mxu0 0.0
  %339 = vmatprep.subr.mxu0 0.0
  %340 = vmatpush1.msra.mxu0 0.0
  %341 = vmatprep.subr.mxu0 0.0
  %342 = vmatpush1.msra.mxu0 0.0
  %343 = vmatprep.subr.mxu0 0.0
  %344 = vmatpush1.msra.mxu0 0.0
  %345 = vmatprep.subr.mxu0 0.0
  %346 = vmatpush1.msra.mxu0 0.0
  %347 = vmatprep.subr.mxu0 0.0
  %348 = vmatpush1.msra.mxu0 0.0
  %349 = vmatprep.subr.mxu0 0.0
  %350 = vmatpush1.msra.mxu0 0.0
  %351 = vmatprep.subr.mxu0 0.0
  %352 = vmatpush1.msra.mxu0 0.0
  %353 = vmatprep.subr.mxu0 0.0
  %354 = vmatpush1.msra.mxu0 0.0
  %355 = vmatprep.subr.mxu0 0.0
  %356 = vmatpush1.msra.mxu0 0.0
  %357 = vmatprep.subr.mxu0 0.0
  %358 = vmatpush1.msra.mxu0 0.0
  %359 = vmatprep.subr.mxu0 0.0
  %360 = vmatpush1.msra.mxu0 0.0
  %361 = vmatprep.subr.mxu0 0.0
  %362 = vmatpush1.msra.mxu0 0.0
  %363 = vmatprep.subr.mxu0 0.0
  %364 = vmatpush1.msra.mxu0 0.0
  %365 = vmatprep.subr.mxu0 0.0
  %366 = vmatpush1.msra.mxu0 0.0
  %367 = vmatprep.subr.mxu0 0.0
  %368 = vmatpush1.msra.mxu0 0.0
  %369 = vmatprep.subr.mxu0 0.0
  %370 = vmatpush1.msra.mxu0 0.0
  %371 = vmatprep.subr.mxu0 0.0
  %372 = vmatpush1.msra.mxu0 0.0
  %373 = vmatprep.subr.mxu0 0.0
  %374 = vmatpush1.msra.mxu0 0.0
  %375 = vmatprep.subr.mxu0 0.0
  %376 = vmatpush1.msra.mxu0 0.0
  %377 = vmatprep.subr.mxu0 0.0
  %378 = vmatpush1.msra.mxu0 0.0
  %379 = vmatprep.subr.mxu0 0.0
  %380 = vmatpush1.msra.mxu0 0.0
  %381 = vmatprep.subr.mxu0 0.0
  %382 = vmatpush1.msra.mxu0 0.0
  %383 = vmatprep.mubr.f32.mxu0 0.0
  %384 = vmatmul.mubr.f32.gmra.mrb[0].mxu0 %v152
  %v385 = vpop.f32.mrb[0].mxu0
  %v386 = vadd.f32 %v317, %v385
  %v387 = vpop.f32.mrb[0].mxu0
  %388 = vdwg.mxu0
  %v389 = vxor.u32 %v386, 2147483648
  %v390 = vmul.f32 %v389, 1.442695
  %v391 = vpow.pop %v390
  %v392 = vadd.f32 %v391, 1.0
  %v393 = vrcp.pop %v392
  %v394 = vmul.f32 1.0, %v393
  %v395 = vmul.f32 %v229, %v309
  %v396 = vtanh.pop %v395
  %v397 = vmul.f32 %v394, %v396
  %v398 = vld [vmem:[%s15] sm:$0xff]
  %v399 = vld [vmem:[%s15 + $0x8] sm:$0xff]
  %v400 = vld [vmem:[%s15 + $0x10] sm:$0xff]
  %v401 = vld [vmem:[%s15 + $0x18] sm:$0xff]
  %v402 = vld [vmem:[%s15 + $0x20] sm:$0xff]
  %v403 = vld [vmem:[%s15 + $0x28] sm:$0xff]
  %v404 = vld [vmem:[%s15 + $0x30] sm:$0xff]
  %v405 = vld [vmem:[%s15 + $0x38] sm:$0xff]
  %v406 = vld [vmem:[%s15 + $0x40] sm:$0xff]
  %v407 = vld [vmem:[%s15 + $0x48] sm:$0xff]
  %v408 = vld [vmem:[%s15 + $0x50] sm:$0xff]
  %v409 = vld [vmem:[%s15 + $0x58] sm:$0xff]
  %v410 = vld [vmem:[%s15 + $0x60] sm:$0xff]
  %v411 = vld [vmem:[%s15 + $0x68] sm:$0xff]
  %v412 = vld [vmem:[%s15 + $0x70] sm:$0xff]
  %v413 = vld [vmem:[%s15 + $0x78] sm:$0xff]
  %v414 = vld [vmem:[%s21] sm:$0x1]
  %v416 = vlaneseq
  %v417 = vshrl.u32 %v416, 7
  %v418 = vsub.s32 0, %v417
  %v419 = vrot.slane %v414, %v418
  %421 = vmatprep.subr.mxu0 0.0
  %422 = vmatpush1.msra.mxu0 %v398
  %423 = vmatprep.subr.mxu0 0.0
  %424 = vmatpush1.msra.mxu0 %v399
  %425 = vmatprep.subr.mxu0 0.0
  %426 = vmatpush1.msra.mxu0 %v400
  %427 = vmatprep.subr.mxu0 0.0
  %428 = vmatpush1.msra.mxu0 %v401
  %429 = vmatprep.subr.mxu0 0.0
  %430 = vmatpush1.msra.mxu0 %v402
  %431 = vmatprep.subr.mxu0 0.0
  %432 = vmatpush1.msra.mxu0 %v403
  %433 = vmatprep.subr.mxu0 0.0
  %434 = vmatpush1.msra.mxu0 %v404
  %435 = vmatprep.subr.mxu0 0.0
  %436 = vmatpush1.msra.mxu0 %v405
  %437 = vmatprep.subr.mxu0 0.0
  %438 = vmatpush1.msra.mxu0 %v406
  %439 = vmatprep.subr.mxu0 0.0
  %440 = vmatpush1.msra.mxu0 %v407
  %441 = vmatprep.subr.mxu0 0.0
  %442 = vmatpush1.msra.mxu0 %v408
  %443 = vmatprep.subr.mxu0 0.0
  %444 = vmatpush1.msra.mxu0 %v409
  %445 = vmatprep.subr.mxu0 0.0
  %446 = vmatpush1.msra.mxu0 %v410
  %447 = vmatprep.subr.mxu0 0.0
  %448 = vmatpush1.msra.mxu0 %v411
  %449 = vmatprep.subr.mxu0 0.0
  %450 = vmatpush1.msra.mxu0 %v412
  %451 = vmatprep.subr.mxu0 0.0
  %452 = vmatpush1.msra.mxu0 %v413
  %453 = vmatprep.subr.mxu0 0.0
  %454 = vmatpush1.msra.mxu0 0.0
  %455 = vmatprep.subr.mxu0 0.0
  %456 = vmatpush1.msra.mxu0 0.0
  %457 = vmatprep.subr.mxu0 0.0
  %458 = vmatpush1.msra.mxu0 0.0
  %459 = vmatprep.subr.mxu0 0.0
  %460 = vmatpush1.msra.mxu0 0.0
  %461 = vmatprep.subr.mxu0 0.0
  %462 = vmatpush1.msra.mxu0 0.0
  %463 = vmatprep.subr.mxu0 0.0
  %464 = vmatpush1.msra.mxu0 0.0
  %465 = vmatprep.subr.mxu0 0.0
  %466 = vmatpush1.msra.mxu0 0.0
  %467 = vmatprep.subr.mxu0 0.0
  %468 = vmatpush1.msra.mxu0 0.0
  %469 = vmatprep.subr.mxu0 0.0
  %470 = vmatpush1.msra.mxu0 0.0
  %471 = vmatprep.subr.mxu0 0.0
  %472 = vmatpush1.msra.mxu0 0.0
  %473 = vmatprep.subr.mxu0 0.0
  %474 = vmatpush1.msra.mxu0 0.0
  %475 = vmatprep.subr.mxu0 0.0
  %476 = vmatpush1.msra.mxu0 0.0
  %477 = vmatprep.subr.mxu0 0.0
  %478 = vmatpush1.msra.mxu0 0.0
  %479 = vmatprep.subr.mxu0 0.0
  %480 = vmatpush1.msra.mxu0 0.0
  %481 = vmatprep.subr.mxu0 0.0
  %482 = vmatpush1.msra.mxu0 0.0
  %483 = vmatprep.subr.mxu0 0.0
  %484 = vmatpush1.msra.mxu0 0.0
  %485 = vmatprep.mubr.f32.mxu0 0.0
  %486 = vmatmul.mubr.f32.gmra.mrb[0].mxu0 %v397
  %v487 = vpop.f32.mrb[0].mxu0
  %v488 = vadd.f32 %v419, %v487
  %v489 = vpop.f32.mrb[0].mxu0
  %490 = vdwg.mxu0
  %v491 = vxor.u32 %v488, 2147483648
  %v492 = vmul.f32 %v491, 1.442695
  %v493 = vpow.pop %v492
  %v494 = vadd.f32 %v493, 1.0
  %v495 = vrcp.pop %v494
  %v496 = vmul.f32 1.0, %v495
  %v497 = vld [vmem:[%s17] sm:$0xff]
  %v498 = vld [vmem:[%s17 + $0x8] sm:$0xff]
  %v499 = vld [vmem:[%s17 + $0x10] sm:$0xff]
  %v500 = vld [vmem:[%s17 + $0x18] sm:$0xff]
  %v501 = vld [vmem:[%s17 + $0x20] sm:$0xff]
  %v502 = vld [vmem:[%s17 + $0x28] sm:$0xff]
  %v503 = vld [vmem:[%s17 + $0x30] sm:$0xff]
  %v504 = vld [vmem:[%s17 + $0x38] sm:$0xff]
  %v505 = vld [vmem:[%s17 + $0x40] sm:$0xff]
  %v506 = vld [vmem:[%s17 + $0x48] sm:$0xff]
  %v507 = vld [vmem:[%s17 + $0x50] sm:$0xff]
  %v508 = vld [vmem:[%s17 + $0x58] sm:$0xff]
  %v509 = vld [vmem:[%s17 + $0x60] sm:$0xff]
  %v510 = vld [vmem:[%s17 + $0x68] sm:$0xff]
  %v511 = vld [vmem:[%s17 + $0x70] sm:$0xff]
  %v512 = vld [vmem:[%s17 + $0x78] sm:$0xff]
  %v513 = vld [vmem:[%s23] sm:$0x1]
  %v515 = vlaneseq
  %v516 = vshrl.u32 %v515, 7
  %v517 = vsub.s32 0, %v516
  %v518 = vrot.slane %v513, %v517
  %520 = vmatprep.subr.mxu0 0.0
  %521 = vmatpush1.msra.mxu0 %v497
  %522 = vmatprep.subr.mxu0 0.0
  %523 = vmatpush1.msra.mxu0 %v498
  %524 = vmatprep.subr.mxu0 0.0
  %525 = vmatpush1.msra.mxu0 %v499
  %526 = vmatprep.subr.mxu0 0.0
  %527 = vmatpush1.msra.mxu0 %v500
  %528 = vmatprep.subr.mxu0 0.0
  %529 = vmatpush1.msra.mxu0 %v501
  %530 = vmatprep.subr.mxu0 0.0
  %531 = vmatpush1.msra.mxu0 %v502
  %532 = vmatprep.subr.mxu0 0.0
  %533 = vmatpush1.msra.mxu0 %v503
  %534 = vmatprep.subr.mxu0 0.0
  %535 = vmatpush1.msra.mxu0 %v504
  %536 = vmatprep.subr.mxu0 0.0
  %537 = vmatpush1.msra.mxu0 %v505
  %538 = vmatprep.subr.mxu0 0.0
  %539 = vmatpush1.msra.mxu0 %v506
  %540 = vmatprep.subr.mxu0 0.0
  %541 = vmatpush1.msra.mxu0 %v507
  %542 = vmatprep.subr.mxu0 0.0
  %543 = vmatpush1.msra.mxu0 %v508
  %544 = vmatprep.subr.mxu0 0.0
  %545 = vmatpush1.msra.mxu0 %v509
  %546 = vmatprep.subr.mxu0 0.0
  %547 = vmatpush1.msra.mxu0 %v510
  %548 = vmatprep.subr.mxu0 0.0
  %549 = vmatpush1.msra.mxu0 %v511
  %550 = vmatprep.subr.mxu0 0.0
  %551 = vmatpush1.msra.mxu0 %v512
  %552 = vmatprep.subr.mxu0 0.0
  %553 = vmatpush1.msra.mxu0 0.0
  %554 = vmatprep.subr.mxu0 0.0
  %555 = vmatpush1.msra.mxu0 0.0
  %556 = vmatprep.subr.mxu0 0.0
  %557 = vmatpush1.msra.mxu0 0.0
  %558 = vmatprep.subr.mxu0 0.0
  %559 = vmatpush1.msra.mxu0 0.0
  %560 = vmatprep.subr.mxu0 0.0
  %561 = vmatpush1.msra.mxu0 0.0
  %562 = vmatprep.subr.mxu0 0.0
  %563 = vmatpush1.msra.mxu0 0.0
  %564 = vmatprep.subr.mxu0 0.0
  %565 = vmatpush1.msra.mxu0 0.0
  %566 = vmatprep.subr.mxu0 0.0
  %567 = vmatpush1.msra.mxu0 0.0
  %568 = vmatprep.subr.mxu0 0.0
  %569 = vmatpush1.msra.mxu0 0.0
  %570 = vmatprep.subr.mxu0 0.0
  %571 = vmatpush1.msra.mxu0 0.0
  %572 = vmatprep.subr.mxu0 0.0
  %573 = vmatpush1.msra.mxu0 0.0
  %574 = vmatprep.subr.mxu0 0.0
  %575 = vmatpush1.msra.mxu0 0.0
  %576 = vmatprep.subr.mxu0 0.0
  %577 = vmatpush1.msra.mxu0 0.0
  %578 = vmatprep.subr.mxu0 0.0
  %579 = vmatpush1.msra.mxu0 0.0
  %580 = vmatprep.subr.mxu0 0.0
  %581 = vmatpush1.msra.mxu0 0.0
  %582 = vmatprep.subr.mxu0 0.0
  %583 = vmatpush1.msra.mxu0 0.0
  %584 = vmatprep.mubr.f32.mxu0 0.0
  %585 = vmatmul.mubr.f32.gmra.mrb[0].mxu0 %v397
  %v586 = vpop.f32.mrb[0].mxu0
  %v587 = vadd.f32 %v518, %v586
  %v588 = vpop.f32.mrb[0].mxu0
  %589 = vdwg.mxu0
  %v590 = vtanh.pop %v587
  %v591 = vld [vmem:[%s19] sm:$0xff]
  %v592 = vld [vmem:[%s19 + $0x8] sm:$0xff]
  %v593 = vld [vmem:[%s19 + $0x10] sm:$0xff]
  %v594 = vld [vmem:[%s19 + $0x18] sm:$0xff]
  %v595 = vld [vmem:[%s19 + $0x20] sm:$0xff]
  %v596 = vld [vmem:[%s19 + $0x28] sm:$0xff]
  %v597 = vld [vmem:[%s19 + $0x30] sm:$0xff]
  %v598 = vld [vmem:[%s19 + $0x38] sm:$0xff]
  %v599 = vld [vmem:[%s19 + $0x40] sm:$0xff]
  %v600 = vld [vmem:[%s19 + $0x48] sm:$0xff]
  %v601 = vld [vmem:[%s19 + $0x50] sm:$0xff]
  %v602 = vld [vmem:[%s19 + $0x58] sm:$0xff]
  %v603 = vld [vmem:[%s19 + $0x60] sm:$0xff]
  %v604 = vld [vmem:[%s19 + $0x68] sm:$0xff]
  %v605 = vld [vmem:[%s19 + $0x70] sm:$0xff]
  %v606 = vld [vmem:[%s19 + $0x78] sm:$0xff]
  %v607 = vld [vmem:[%s25] sm:$0x1]
  %v609 = vlaneseq
  %v610 = vshrl.u32 %v609, 7
  %v611 = vsub.s32 0, %v610
  %v612 = vrot.slane %v607, %v611
  %614 = vmatprep.subr.mxu0 0.0
  %615 = vmatpush1.msra.mxu0 %v591
  %616 = vmatprep.subr.mxu0 0.0
  %617 = vmatpush1.msra.mxu0 %v592
  %618 = vmatprep.subr.mxu0 0.0
  %619 = vmatpush1.msra.mxu0 %v593
  %620 = vmatprep.subr.mxu0 0.0
  %621 = vmatpush1.msra.mxu0 %v594
  %622 = vmatprep.subr.mxu0 0.0
  %623 = vmatpush1.msra.mxu0 %v595
  %624 = vmatprep.subr.mxu0 0.0
  %625 = vmatpush1.msra.mxu0 %v596
  %626 = vmatprep.subr.mxu0 0.0
  %627 = vmatpush1.msra.mxu0 %v597
  %628 = vmatprep.subr.mxu0 0.0
  %629 = vmatpush1.msra.mxu0 %v598
  %630 = vmatprep.subr.mxu0 0.0
  %631 = vmatpush1.msra.mxu0 %v599
  %632 = vmatprep.subr.mxu0 0.0
  %633 = vmatpush1.msra.mxu0 %v600
  %634 = vmatprep.subr.mxu0 0.0
  %635 = vmatpush1.msra.mxu0 %v601
  %636 = vmatprep.subr.mxu0 0.0
  %637 = vmatpush1.msra.mxu0 %v602
  %638 = vmatprep.subr.mxu0 0.0
  %639 = vmatpush1.msra.mxu0 %v603
  %640 = vmatprep.subr.mxu0 0.0
  %641 = vmatpush1.msra.mxu0 %v604
  %642 = vmatprep.subr.mxu0 0.0
  %643 = vmatpush1.msra.mxu0 %v605
  %644 = vmatprep.subr.mxu0 0.0
  %645 = vmatpush1.msra.mxu0 %v606
  %646 = vmatprep.subr.mxu0 0.0
  %647 = vmatpush1.msra.mxu0 0.0
  %648 = vmatprep.subr.mxu0 0.0
  %649 = vmatpush1.msra.mxu0 0.0
  %650 = vmatprep.subr.mxu0 0.0
  %651 = vmatpush1.msra.mxu0 0.0
  %652 = vmatprep.subr.mxu0 0.0
  %653 = vmatpush1.msra.mxu0 0.0
  %654 = vmatprep.subr.mxu0 0.0
  %655 = vmatpush1.msra.mxu0 0.0
  %656 = vmatprep.subr.mxu0 0.0
  %657 = vmatpush1.msra.mxu0 0.0
  %658 = vmatprep.subr.mxu0 0.0
  %659 = vmatpush1.msra.mxu0 0.0
  %660 = vmatprep.subr.mxu0 0.0
  %661 = vmatpush1.msra.mxu0 0.0
  %662 = vmatprep.subr.mxu0 0.0
  %663 = vmatpush1.msra.mxu0 0.0
  %664 = vmatprep.subr.mxu0 0.0
  %665 = vmatpush1.msra.mxu0 0.0
  %666 = vmatprep.subr.mxu0 0.0
  %667 = vmatpush1.msra.mxu0 0.0
  %668 = vmatprep.subr.mxu0 0.0
  %669 = vmatpush1.msra.mxu0 0.0
  %670 = vmatprep.subr.mxu0 0.0
  %671 = vmatpush1.msra.mxu0 0.0
  %672 = vmatprep.subr.mxu0 0.0
  %673 = vmatpush1.msra.mxu0 0.0
  %674 = vmatprep.subr.mxu0 0.0
  %675 = vmatpush1.msra.mxu0 0.0
  %676 = vmatprep.subr.mxu0 0.0
  %677 = vmatpush1.msra.mxu0 0.0
  %678 = vmatprep.mubr.f32.mxu0 0.0
  %679 = vmatmul.mubr.f32.gmra.mrb[0].mxu0 %v397
  %v680 = vpop.f32.mrb[0].mxu0
  %v681 = vadd.f32 %v612, %v680
  %v682 = vpop.f32.mrb[0].mxu0
  %683 = vdwg.mxu0
  %v684 = vxor.u32 %v681, 2147483648
  %v685 = vmul.f32 %v684, 1.442695
  %v686 = vpow.pop %v685
  %v687 = vadd.f32 %v686, 1.0
  %v688 = vrcp.pop %v687
  %v689 = vmul.f32 1.0, %v688
  %v690 = vmul.f32 %v496, %v590
  %v691 = vtanh.pop %v690
  %v692 = vmul.f32 %v689, %v691
  %v693 = vld [vmem:[%s27] sm:$0xff]
  %v694 = vld [vmem:[%s27 + $0x8] sm:$0xff]
  %v695 = vld [vmem:[%s27 + $0x10] sm:$0xff]
  %v696 = vld [vmem:[%s27 + $0x18] sm:$0xff]
  %v697 = vld [vmem:[%s27 + $0x20] sm:$0xff]
  %v698 = vld [vmem:[%s27 + $0x28] sm:$0xff]
  %v699 = vld [vmem:[%s27 + $0x30] sm:$0xff]
  %v700 = vld [vmem:[%s27 + $0x38] sm:$0xff]
  %v701 = vld [vmem:[%s27 + $0x40] sm:$0xff]
  %v702 = vld [vmem:[%s27 + $0x48] sm:$0xff]
  %v703 = vld [vmem:[%s27 + $0x50] sm:$0xff]
  %v704 = vld [vmem:[%s27 + $0x58] sm:$0xff]
  %v705 = vld [vmem:[%s27 + $0x60] sm:$0xff]
  %v706 = vld [vmem:[%s27 + $0x68] sm:$0xff]
  %v707 = vld [vmem:[%s27 + $0x70] sm:$0xff]
  %v708 = vld [vmem:[%s27 + $0x78] sm:$0xff]
  %v709 = vld [vmem:[%s33] sm:$0x1]
  %v711 = vlaneseq
  %v712 = vshrl.u32 %v711, 7
  %v713 = vsub.s32 0, %v712
  %v714 = vrot.slane %v709, %v713
  %716 = vmatprep.subr.mxu0 0.0
  %717 = vmatpush1.msra.mxu0 %v693
  %718 = vmatprep.subr.mxu0 0.0
  %719 = vmatpush1.msra.mxu0 %v694
  %720 = vmatprep.subr.mxu0 0.0
  %721 = vmatpush1.msra.mxu0 %v695
  %722 = vmatprep.subr.mxu0 0.0
  %723 = vmatpush1.msra.mxu0 %v696
  %724 = vmatprep.subr.mxu0 0.0
  %725 = vmatpush1.msra.mxu0 %v697
  %726 = vmatprep.subr.mxu0 0.0
  %727 = vmatpush1.msra.mxu0 %v698
  %728 = vmatprep.subr.mxu0 0.0
  %729 = vmatpush1.msra.mxu0 %v699
  %730 = vmatprep.subr.mxu0 0.0
  %731 = vmatpush1.msra.mxu0 %v700
  %732 = vmatprep.subr.mxu0 0.0
  %733 = vmatpush1.msra.mxu0 %v701
  %734 = vmatprep.subr.mxu0 0.0
  %735 = vmatpush1.msra.mxu0 %v702
  %736 = vmatprep.subr.mxu0 0.0
  %737 = vmatpush1.msra.mxu0 %v703
  %738 = vmatprep.subr.mxu0 0.0
  %739 = vmatpush1.msra.mxu0 %v704
  %740 = vmatprep.subr.mxu0 0.0
  %741 = vmatpush1.msra.mxu0 %v705
  %742 = vmatprep.subr.mxu0 0.0
  %743 = vmatpush1.msra.mxu0 %v706
  %744 = vmatprep.subr.mxu0 0.0
  %745 = vmatpush1.msra.mxu0 %v707
  %746 = vmatprep.subr.mxu0 0.0
  %747 = vmatpush1.msra.mxu0 %v708
  %748 = vmatprep.subr.mxu0 0.0
  %749 = vmatpush1.msra.mxu0 0.0
  %750 = vmatprep.subr.mxu0 0.0
  %751 = vmatpush1.msra.mxu0 0.0
  %752 = vmatprep.subr.mxu0 0.0
  %753 = vmatpush1.msra.mxu0 0.0
  %754 = vmatprep.subr.mxu0 0.0
  %755 = vmatpush1.msra.mxu0 0.0
  %756 = vmatprep.subr.mxu0 0.0
  %757 = vmatpush1.msra.mxu0 0.0
  %758 = vmatprep.subr.mxu0 0.0
  %759 = vmatpush1.msra.mxu0 0.0
  %760 = vmatprep.subr.mxu0 0.0
  %761 = vmatpush1.msra.mxu0 0.0
  %762 = vmatprep.subr.mxu0 0.0
  %763 = vmatpush1.msra.mxu0 0.0
  %764 = vmatprep.subr.mxu0 0.0
  %765 = vmatpush1.msra.mxu0 0.0
  %766 = vmatprep.subr.mxu0 0.0
  %767 = vmatpush1.msra.mxu0 0.0
  %768 = vmatprep.subr.mxu0 0.0
  %769 = vmatpush1.msra.mxu0 0.0
  %770 = vmatprep.subr.mxu0 0.0
  %771 = vmatpush1.msra.mxu0 0.0
  %772 = vmatprep.subr.mxu0 0.0
  %773 = vmatpush1.msra.mxu0 0.0
  %774 = vmatprep.subr.mxu0 0.0
  %775 = vmatpush1.msra.mxu0 0.0
  %776 = vmatprep.subr.mxu0 0.0
  %777 = vmatpush1.msra.mxu0 0.0
  %778 = vmatprep.subr.mxu0 0.0
  %779 = vmatpush1.msra.mxu0 0.0
  %780 = vmatprep.mubr.f32.mxu0 0.0
  %781 = vmatmul.mubr.f32.gmra.mrb[0].mxu0 %v692
  %v782 = vpop.f32.mrb[0].mxu0
  %v783 = vadd.f32 %v714, %v782
  %v784 = vpop.f32.mrb[0].mxu0
  %785 = vdwg.mxu0
  %v786 = vxor.u32 %v783, 2147483648
  %v787 = vmul.f32 %v786, 1.442695
  %v788 = vpow.pop %v787
  %v789 = vadd.f32 %v788, 1.0
  %v790 = vrcp.pop %v789
  %v791 = vmul.f32 1.0, %v790
  %v792 = vld [vmem:[%s29] sm:$0xff]
  %v793 = vld [vmem:[%s29 + $0x8] sm:$0xff]
  %v794 = vld [vmem:[%s29 + $0x10] sm:$0xff]
  %v795 = vld [vmem:[%s29 + $0x18] sm:$0xff]
  %v796 = vld [vmem:[%s29 + $0x20] sm:$0xff]
  %v797 = vld [vmem:[%s29 + $0x28] sm:$0xff]
  %v798 = vld [vmem:[%s29 + $0x30] sm:$0xff]
  %v799 = vld [vmem:[%s29 + $0x38] sm:$0xff]
  %v800 = vld [vmem:[%s29 + $0x40] sm:$0xff]
  %v801 = vld [vmem:[%s29 + $0x48] sm:$0xff]
  %v802 = vld [vmem:[%s29 + $0x50] sm:$0xff]
  %v803 = vld [vmem:[%s29 + $0x58] sm:$0xff]
  %v804 = vld [vmem:[%s29 + $0x60] sm:$0xff]
  %v805 = vld [vmem:[%s29 + $0x68] sm:$0xff]
  %v806 = vld [vmem:[%s29 + $0x70] sm:$0xff]
  %v807 = vld [vmem:[%s29 + $0x78] sm:$0xff]
  %v808 = vld [vmem:[%s35] sm:$0x1]
  %v810 = vlaneseq
  %v811 = vshrl.u32 %v810, 7
  %v812 = vsub.s32 0, %v811
  %v813 = vrot.slane %v808, %v812
  %815 = vmatprep.subr.mxu0 0.0
  %816 = vmatpush1.msra.mxu0 %v792
  %817 = vmatprep.subr.mxu0 0.0
  %818 = vmatpush1.msra.mxu0 %v793
  %819 = vmatprep.subr.mxu0 0.0
  %820 = vmatpush1.msra.mxu0 %v794
  %821 = vmatprep.subr.mxu0 0.0
  %822 = vmatpush1.msra.mxu0 %v795
  %823 = vmatprep.subr.mxu0 0.0
  %824 = vmatpush1.msra.mxu0 %v796
  %825 = vmatprep.subr.mxu0 0.0
  %826 = vmatpush1.msra.mxu0 %v797
  %827 = vmatprep.subr.mxu0 0.0
  %828 = vmatpush1.msra.mxu0 %v798
  %829 = vmatprep.subr.mxu0 0.0
  %830 = vmatpush1.msra.mxu0 %v799
  %831 = vmatprep.subr.mxu0 0.0
  %832 = vmatpush1.msra.mxu0 %v800
  %833 = vmatprep.subr.mxu0 0.0
  %834 = vmatpush1.msra.mxu0 %v801
  %835 = vmatprep.subr.mxu0 0.0
  %836 = vmatpush1.msra.mxu0 %v802
  %837 = vmatprep.subr.mxu0 0.0
  %838 = vmatpush1.msra.mxu0 %v803
  %839 = vmatprep.subr.mxu0 0.0
  %840 = vmatpush1.msra.mxu0 %v804
  %841 = vmatprep.subr.mxu0 0.0
  %842 = vmatpush1.msra.mxu0 %v805
  %843 = vmatprep.subr.mxu0 0.0
  %844 = vmatpush1.msra.mxu0 %v806
  %845 = vmatprep.subr.mxu0 0.0
  %846 = vmatpush1.msra.mxu0 %v807
  %847 = vmatprep.subr.mxu0 0.0
  %848 = vmatpush1.msra.mxu0 0.0
  %849 = vmatprep.subr.mxu0 0.0
  %850 = vmatpush1.msra.mxu0 0.0
  %851 = vmatprep.subr.mxu0 0.0
  %852 = vmatpush1.msra.mxu0 0.0
  %853 = vmatprep.subr.mxu0 0.0
  %854 = vmatpush1.msra.mxu0 0.0
  %855 = vmatprep.subr.mxu0 0.0
  %856 = vmatpush1.msra.mxu0 0.0
  %857 = vmatprep.subr.mxu0 0.0
  %858 = vmatpush1.msra.mxu0 0.0
  %859 = vmatprep.subr.mxu0 0.0
  %860 = vmatpush1.msra.mxu0 0.0
  %861 = vmatprep.subr.mxu0 0.0
  %862 = vmatpush1.msra.mxu0 0.0
  %863 = vmatprep.subr.mxu0 0.0
  %864 = vmatpush1.msra.mxu0 0.0
  %865 = vmatprep.subr.mxu0 0.0
  %866 = vmatpush1.msra.mxu0 0.0
  %867 = vmatprep.subr.mxu0 0.0
  %868 = vmatpush1.msra.mxu0 0.0
  %869 = vmatprep.subr.mxu0 0.0
  %870 = vmatpush1.msra.mxu0 0.0
  %871 = vmatprep.subr.mxu0 0.0
  %872 = vmatpush1.msra.mxu0 0.0
  %873 = vmatprep.subr.mxu0 0.0
  %874 = vmatpush1.msra.mxu0 0.0
  %875 = vmatprep.subr.mxu0 0.0
  %876 = vmatpush1.msra.mxu0 0.0
  %877 = vmatprep.subr.mxu0 0.0
  %878 = vmatpush1.msra.mxu0 0.0
  %879 = vmatprep.mubr.f32.mxu0 0.0
  %880 = vmatmul.mubr.f32.gmra.mrb[0].mxu0 %v692
  %v881 = vpop.f32.mrb[0].mxu0
  %v882 = vadd.f32 %v813, %v881
  %v883 = vpop.f32.mrb[0].mxu0
  %884 = vdwg.mxu0
  %v885 = vtanh.pop %v882
  %v886 = vld [vmem:[%s31] sm:$0xff]
  %v887 = vld [vmem:[%s31 + $0x8] sm:$0xff]
  %v888 = vld [vmem:[%s31 + $0x10] sm:$0xff]
  %v889 = vld [vmem:[%s31 + $0x18] sm:$0xff]
  %v890 = vld [vmem:[%s31 + $0x20] sm:$0xff]
  %v891 = vld [vmem:[%s31 + $0x28] sm:$0xff]
  %v892 = vld [vmem:[%s31 + $0x30] sm:$0xff]
  %v893 = vld [vmem:[%s31 + $0x38] sm:$0xff]
  %v894 = vld [vmem:[%s31 + $0x40] sm:$0xff]
  %v895 = vld [vmem:[%s31 + $0x48] sm:$0xff]
  %v896 = vld [vmem:[%s31 + $0x50] sm:$0xff]
  %v897 = vld [vmem:[%s31 + $0x58] sm:$0xff]
  %v898 = vld [vmem:[%s31 + $0x60] sm:$0xff]
  %v899 = vld [vmem:[%s31 + $0x68] sm:$0xff]
  %v900 = vld [vmem:[%s31 + $0x70] sm:$0xff]
  %v901 = vld [vmem:[%s31 + $0x78] sm:$0xff]
  %v902 = vld [vmem:[%s37] sm:$0x1]
  %v904 = vlaneseq
  %v905 = vshrl.u32 %v904, 7
  %v906 = vsub.s32 0, %v905
  %v907 = vrot.slane %v902, %v906
  %909 = vmatprep.subr.mxu0 0.0
  %910 = vmatpush1.msra.mxu0 %v886
  %911 = vmatprep.subr.mxu0 0.0
  %912 = vmatpush1.msra.mxu0 %v887
  %913 = vmatprep.subr.mxu0 0.0
  %914 = vmatpush1.msra.mxu0 %v888
  %915 = vmatprep.subr.mxu0 0.0
  %916 = vmatpush1.msra.mxu0 %v889
  %917 = vmatprep.subr.mxu0 0.0
  %918 = vmatpush1.msra.mxu0 %v890
  %919 = vmatprep.subr.mxu0 0.0
  %920 = vmatpush1.msra.mxu0 %v891
  %921 = vmatprep.subr.mxu0 0.0
  %922 = vmatpush1.msra.mxu0 %v892
  %923 = vmatprep.subr.mxu0 0.0
  %924 = vmatpush1.msra.mxu0 %v893
  %925 = vmatprep.subr.mxu0 0.0
  %926 = vmatpush1.msra.mxu0 %v894
  %927 = vmatprep.subr.mxu0 0.0
  %928 = vmatpush1.msra.mxu0 %v895
  %929 = vmatprep.subr.mxu0 0.0
  %930 = vmatpush1.msra.mxu0 %v896
  %931 = vmatprep.subr.mxu0 0.0
  %932 = vmatpush1.msra.mxu0 %v897
  %933 = vmatprep.subr.mxu0 0.0
  %934 = vmatpush1.msra.mxu0 %v898
  %935 = vmatprep.subr.mxu0 0.0
  %936 = vmatpush1.msra.mxu0 %v899
  %937 = vmatprep.subr.mxu0 0.0
  %938 = vmatpush1.msra.mxu0 %v900
  %939 = vmatprep.subr.mxu0 0.0
  %940 = vmatpush1.msra.mxu0 %v901
  %941 = vmatprep.subr.mxu0 0.0
  %942 = vmatpush1.msra.mxu0 0.0
  %943 = vmatprep.subr.mxu0 0.0
  %944 = vmatpush1.msra.mxu0 0.0
  %945 = vmatprep.subr.mxu0 0.0
  %946 = vmatpush1.msra.mxu0 0.0
  %947 = vmatprep.subr.mxu0 0.0
  %948 = vmatpush1.msra.mxu0 0.0
  %949 = vmatprep.subr.mxu0 0.0
  %950 = vmatpush1.msra.mxu0 0.0
  %951 = vmatprep.subr.mxu0 0.0
  %952 = vmatpush1.msra.mxu0 0.0
  %953 = vmatprep.subr.mxu0 0.0
  %954 = vmatpush1.msra.mxu0 0.0
  %955 = vmatprep.subr.mxu0 0.0
  %956 = vmatpush1.msra.mxu0 0.0
  %957 = vmatprep.subr.mxu0 0.0
  %958 = vmatpush1.msra.mxu0 0.0
  %959 = vmatprep.subr.mxu0 0.0
  %960 = vmatpush1.msra.mxu0 0.0
  %961 = vmatprep.subr.mxu0 0.0
  %962 = vmatpush1.msra.mxu0 0.0
  %963 = vmatprep.subr.mxu0 0.0
  %964 = vmatpush1.msra.mxu0 0.0
  %965 = vmatprep.subr.mxu0 0.0
  %966 = vmatpush1.msra.mxu0 0.0
  %967 = vmatprep.subr.mxu0 0.0
  %968 = vmatpush1.msra.mxu0 0.0
  %969 = vmatprep.subr.mxu0 0.0
  %970 = vmatpush1.msra.mxu0 0.0
  %971 = vmatprep.subr.mxu0 0.0
  %972 = vmatpush1.msra.mxu0 0.0
  %973 = vmatprep.mubr.f32.mxu0 0.0
  %974 = vmatmul.mubr.f32.gmra.mrb[0].mxu0 %v692
  %v975 = vpop.f32.mrb[0].mxu0
  %v976 = vadd.f32 %v907, %v975
  %v977 = vpop.f32.mrb[0].mxu0
  %978 = vdwg.mxu0
  %v979 = vxor.u32 %v976, 2147483648
  %v980 = vmul.f32 %v979, 1.442695
  %v981 = vpow.pop %v980
  %v982 = vadd.f32 %v981, 1.0
  %v983 = vrcp.pop %v982
  %v984 = vmul.f32 1.0, %v983
  %v985 = vmul.f32 %v791, %v885
  %v986 = vtanh.pop %v985
  %v987 = vmul.f32 %v984, %v986
  %v988 = vld [vmem:[%s39] sm:$0xff]
  %v989 = vld [vmem:[%s39 + $0x8] sm:$0xff]
  %v990 = vld [vmem:[%s39 + $0x10] sm:$0xff]
  %v991 = vld [vmem:[%s39 + $0x18] sm:$0xff]
  %v992 = vld [vmem:[%s39 + $0x20] sm:$0xff]
  %v993 = vld [vmem:[%s39 + $0x28] sm:$0xff]
  %v994 = vld [vmem:[%s39 + $0x30] sm:$0xff]
  %v995 = vld [vmem:[%s39 + $0x38] sm:$0xff]
  %v996 = vld [vmem:[%s45] sm:$0x1]
  %v998 = vlaneseq
  %v999 = vshrl.u32 %v998, 7
  %v1000 = vsub.s32 0, %v999
  %v1001 = vrot.slane %v996, %v1000
  %vm1003 = vcmask 523264
  %v1005 = vsel %vm1003, %v987, 0
  %1007 = vmatprep.subr.mxu0 0.0
  %1008 = vmatpush1.msra.mxu0 %v988
  %1009 = vmatprep.subr.mxu0 0.0
  %1010 = vmatpush1.msra.mxu0 %v989
  %1011 = vmatprep.subr.mxu0 0.0
  %1012 = vmatpush1.msra.mxu0 %v990
  %1013 = vmatprep.subr.mxu0 0.0
  %1014 = vmatpush1.msra.mxu0 %v991
  %1015 = vmatprep.subr.mxu0 0.0
  %1016 = vmatpush1.msra.mxu0 %v992
  %1017 = vmatprep.subr.mxu0 0.0
  %1018 = vmatpush1.msra.mxu0 %v993
  %1019 = vmatprep.subr.mxu0 0.0
  %1020 = vmatpush1.msra.mxu0 %v994
  %1021 = vmatprep.subr.mxu0 0.0
  %1022 = vmatpush1.msra.mxu0 %v995
  %1023 = vmatprep.subr.mxu0 0.0
  %1024 = vmatpush1.msra.mxu0 0.0
  %1025 = vmatprep.subr.mxu0 0.0
  %1026 = vmatpush1.msra.mxu0 0.0
  %1027 = vmatprep.subr.mxu0 0.0
  %1028 = vmatpush1.msra.mxu0 0.0
  %1029 = vmatprep.subr.mxu0 0.0
  %1030 = vmatpush1.msra.mxu0 0.0
  %1031 = vmatprep.subr.mxu0 0.0
  %1032 = vmatpush1.msra.mxu0 0.0
  %1033 = vmatprep.subr.mxu0 0.0
  %1034 = vmatpush1.msra.mxu0 0.0
  %1035 = vmatprep.subr.mxu0 0.0
  %1036 = vmatpush1.msra.mxu0 0.0
  %1037 = vmatprep.subr.mxu0 0.0
  %1038 = vmatpush1.msra.mxu0 0.0
  %1039 = vmatprep.subr.mxu0 0.0
  %1040 = vmatpush1.msra.mxu0 0.0
  %1041 = vmatprep.subr.mxu0 0.0
  %1042 = vmatpush1.msra.mxu0 0.0
  %1043 = vmatprep.subr.mxu0 0.0
  %1044 = vmatpush1.msra.mxu0 0.0
  %1045 = vmatprep.subr.mxu0 0.0
  %1046 = vmatpush1.msra.mxu0 0.0
  %1047 = vmatprep.subr.mxu0 0.0
  %1048 = vmatpush1.msra.mxu0 0.0
  %1049 = vmatprep.subr.mxu0 0.0
  %1050 = vmatpush1.msra.mxu0 0.0
  %1051 = vmatprep.subr.mxu0 0.0
  %1052 = vmatpush1.msra.mxu0 0.0
  %1053 = vmatprep.subr.mxu0 0.0
  %1054 = vmatpush1.msra.mxu0 0.0
  %1055 = vmatprep.subr.mxu0 0.0
  %1056 = vmatpush1.msra.mxu0 0.0
  %1057 = vmatprep.subr.mxu0 0.0
  %1058 = vmatpush1.msra.mxu0 0.0
  %1059 = vmatprep.subr.mxu0 0.0
  %1060 = vmatpush1.msra.mxu0 0.0
  %1061 = vmatprep.subr.mxu0 0.0
  %1062 = vmatpush1.msra.mxu0 0.0
  %1063 = vmatprep.subr.mxu0 0.0
  %1064 = vmatpush1.msra.mxu0 0.0
  %1065 = vmatprep.subr.mxu0 0.0
  %1066 = vmatpush1.msra.mxu0 0.0
  %1067 = vmatprep.subr.mxu0 0.0
  %1068 = vmatpush1.msra.mxu0 0.0
  %1069 = vmatprep.subr.mxu0 0.0
  %1070 = vmatpush1.msra.mxu0 0.0
  %1071 = vmatprep.mubr.f32.mxu0 0.0
  %1072 = vmatmul.mubr.f32.gmra.mrb[0].mxu0 %v1005
  %v1073 = vpop.f32.mrb[0].mxu0
  %v1074 = vadd.f32 %v1001, %v1073
  %v1075 = vpop.f32.mrb[0].mxu0
  %1076 = vdwg.mxu0
  %v1077 = vxor.u32 %v1074, 2147483648
  %v1078 = vmul.f32 %v1077, 1.442695
  %v1079 = vpow.pop %v1078
  %v1080 = vadd.f32 %v1079, 1.0
  %v1081 = vrcp.pop %v1080
  %v1082 = vmul.f32 1.0, %v1081
  %v1083 = vld [vmem:[%s41] sm:$0xff]
  %v1084 = vld [vmem:[%s41 + $0x8] sm:$0xff]
  %v1085 = vld [vmem:[%s41 + $0x10] sm:$0xff]
  %v1086 = vld [vmem:[%s41 + $0x18] sm:$0xff]
  %v1087 = vld [vmem:[%s41 + $0x20] sm:$0xff]
  %v1088 = vld [vmem:[%s41 + $0x28] sm:$0xff]
  %v1089 = vld [vmem:[%s41 + $0x30] sm:$0xff]
  %v1090 = vld [vmem:[%s41 + $0x38] sm:$0xff]
  %v1091 = vld [vmem:[%s47] sm:$0x1]
  %v1093 = vlaneseq
  %v1094 = vshrl.u32 %v1093, 7
  %v1095 = vsub.s32 0, %v1094
  %v1096 = vrot.slane %v1091, %v1095
  %1098 = vmatprep.subr.mxu0 0.0
  %1099 = vmatpush1.msra.mxu0 %v1083
  %1100 = vmatprep.subr.mxu0 0.0
  %1101 = vmatpush1.msra.mxu0 %v1084
  %1102 = vmatprep.subr.mxu0 0.0
  %1103 = vmatpush1.msra.mxu0 %v1085
  %1104 = vmatprep.subr.mxu0 0.0
  %1105 = vmatpush1.msra.mxu0 %v1086
  %1106 = vmatprep.subr.mxu0 0.0
  %1107 = vmatpush1.msra.mxu0 %v1087
  %1108 = vmatprep.subr.mxu0 0.0
  %1109 = vmatpush1.msra.mxu0 %v1088
  %1110 = vmatprep.subr.mxu0 0.0
  %1111 = vmatpush1.msra.mxu0 %v1089
  %1112 = vmatprep.subr.mxu0 0.0
  %1113 = vmatpush1.msra.mxu0 %v1090
  %1114 = vmatprep.subr.mxu0 0.0
  %1115 = vmatpush1.msra.mxu0 0.0
  %1116 = vmatprep.subr.mxu0 0.0
  %1117 = vmatpush1.msra.mxu0 0.0
  %1118 = vmatprep.subr.mxu0 0.0
  %1119 = vmatpush1.msra.mxu0 0.0
  %1120 = vmatprep.subr.mxu0 0.0
  %1121 = vmatpush1.msra.mxu0 0.0
  %1122 = vmatprep.subr.mxu0 0.0
  %1123 = vmatpush1.msra.mxu0 0.0
  %1124 = vmatprep.subr.mxu0 0.0
  %1125 = vmatpush1.msra.mxu0 0.0
  %1126 = vmatprep.subr.mxu0 0.0
  %1127 = vmatpush1.msra.mxu0 0.0
  %1128 = vmatprep.subr.mxu0 0.0
  %1129 = vmatpush1.msra.mxu0 0.0
  %1130 = vmatprep.subr.mxu0 0.0
  %1131 = vmatpush1.msra.mxu0 0.0
  %1132 = vmatprep.subr.mxu0 0.0
  %1133 = vmatpush1.msra.mxu0 0.0
  %1134 = vmatprep.subr.mxu0 0.0
  %1135 = vmatpush1.msra.mxu0 0.0
  %1136 = vmatprep.subr.mxu0 0.0
  %1137 = vmatpush1.msra.mxu0 0.0
  %1138 = vmatprep.subr.mxu0 0.0
  %1139 = vmatpush1.msra.mxu0 0.0
  %1140 = vmatprep.subr.mxu0 0.0
  %1141 = vmatpush1.msra.mxu0 0.0
  %1142 = vmatprep.subr.mxu0 0.0
  %1143 = vmatpush1.msra.mxu0 0.0
  %1144 = vmatprep.subr.mxu0 0.0
  %1145 = vmatpush1.msra.mxu0 0.0
  %1146 = vmatprep.subr.mxu0 0.0
  %1147 = vmatpush1.msra.mxu0 0.0
  %1148 = vmatprep.subr.mxu0 0.0
  %1149 = vmatpush1.msra.mxu0 0.0
  %1150 = vmatprep.subr.mxu0 0.0
  %1151 = vmatpush1.msra.mxu0 0.0
  %1152 = vmatprep.subr.mxu0 0.0
  %1153 = vmatpush1.msra.mxu0 0.0
  %1154 = vmatprep.subr.mxu0 0.0
  %1155 = vmatpush1.msra.mxu0 0.0
  %1156 = vmatprep.subr.mxu0 0.0
  %1157 = vmatpush1.msra.mxu0 0.0
  %1158 = vmatprep.subr.mxu0 0.0
  %1159 = vmatpush1.msra.mxu0 0.0
  %1160 = vmatprep.subr.mxu0 0.0
  %1161 = vmatpush1.msra.mxu0 0.0
  %1162 = vmatprep.mubr.f32.mxu0 0.0
  %1163 = vmatmul.mubr.f32.gmra.mrb[0].mxu0 %v1005
  %v1164 = vpop.f32.mrb[0].mxu0
  %v1165 = vadd.f32 %v1096, %v1164
  %v1166 = vpop.f32.mrb[0].mxu0
  %1167 = vdwg.mxu0
  %v1168 = vtanh.pop %v1165
  %v1169 = vld [vmem:[%s43] sm:$0xff]
  %v1170 = vld [vmem:[%s43 + $0x8] sm:$0xff]
  %v1171 = vld [vmem:[%s43 + $0x10] sm:$0xff]
  %v1172 = vld [vmem:[%s43 + $0x18] sm:$0xff]
  %v1173 = vld [vmem:[%s43 + $0x20] sm:$0xff]
  %v1174 = vld [vmem:[%s43 + $0x28] sm:$0xff]
  %v1175 = vld [vmem:[%s43 + $0x30] sm:$0xff]
  %v1176 = vld [vmem:[%s43 + $0x38] sm:$0xff]
  %v1177 = vld [vmem:[%s49] sm:$0x1]
  %v1179 = vlaneseq
  %v1180 = vshrl.u32 %v1179, 7
  %v1181 = vsub.s32 0, %v1180
  %v1182 = vrot.slane %v1177, %v1181
  %1184 = vmatprep.subr.mxu0 0.0
  %1185 = vmatpush1.msra.mxu0 %v1169
  %1186 = vmatprep.subr.mxu0 0.0
  %1187 = vmatpush1.msra.mxu0 %v1170
  %1188 = vmatprep.subr.mxu0 0.0
  %1189 = vmatpush1.msra.mxu0 %v1171
  %1190 = vmatprep.subr.mxu0 0.0
  %1191 = vmatpush1.msra.mxu0 %v1172
  %1192 = vmatprep.subr.mxu0 0.0
  %1193 = vmatpush1.msra.mxu0 %v1173
  %1194 = vmatprep.subr.mxu0 0.0
  %1195 = vmatpush1.msra.mxu0 %v1174
  %1196 = vmatprep.subr.mxu0 0.0
  %1197 = vmatpush1.msra.mxu0 %v1175
  %1198 = vmatprep.subr.mxu0 0.0
  %1199 = vmatpush1.msra.mxu0 %v1176
  %1200 = vmatprep.subr.mxu0 0.0
  %1201 = vmatpush1.msra.mxu0 0.0
  %1202 = vmatprep.subr.mxu0 0.0
  %1203 = vmatpush1.msra.mxu0 0.0
  %1204 = vmatprep.subr.mxu0 0.0
  %1205 = vmatpush1.msra.mxu0 0.0
  %1206 = vmatprep.subr.mxu0 0.0
  %1207 = vmatpush1.msra.mxu0 0.0
  %1208 = vmatprep.subr.mxu0 0.0
  %1209 = vmatpush1.msra.mxu0 0.0
  %1210 = vmatprep.subr.mxu0 0.0
  %1211 = vmatpush1.msra.mxu0 0.0
  %1212 = vmatprep.subr.mxu0 0.0
  %1213 = vmatpush1.msra.mxu0 0.0
  %1214 = vmatprep.subr.mxu0 0.0
  %1215 = vmatpush1.msra.mxu0 0.0
  %1216 = vmatprep.subr.mxu0 0.0
  %1217 = vmatpush1.msra.mxu0 0.0
  %1218 = vmatprep.subr.mxu0 0.0
  %1219 = vmatpush1.msra.mxu0 0.0
  %1220 = vmatprep.subr.mxu0 0.0
  %1221 = vmatpush1.msra.mxu0 0.0
  %1222 = vmatprep.subr.mxu0 0.0
  %1223 = vmatpush1.msra.mxu0 0.0
  %1224 = vmatprep.subr.mxu0 0.0
  %1225 = vmatpush1.msra.mxu0 0.0
  %1226 = vmatprep.subr.mxu0 0.0
  %1227 = vmatpush1.msra.mxu0 0.0
  %1228 = vmatprep.subr.mxu0 0.0
  %1229 = vmatpush1.msra.mxu0 0.0
  %1230 = vmatprep.subr.mxu0 0.0
  %1231 = vmatpush1.msra.mxu0 0.0
  %1232 = vmatprep.subr.mxu0 0.0
  %1233 = vmatpush1.msra.mxu0 0.0
  %1234 = vmatprep.subr.mxu0 0.0
  %1235 = vmatpush1.msra.mxu0 0.0
  %1236 = vmatprep.subr.mxu0 0.0
  %1237 = vmatpush1.msra.mxu0 0.0
  %1238 = vmatprep.subr.mxu0 0.0
  %1239 = vmatpush1.msra.mxu0 0.0
  %1240 = vmatprep.subr.mxu0 0.0
  %1241 = vmatpush1.msra.mxu0 0.0
  %1242 = vmatprep.subr.mxu0 0.0
  %1243 = vmatpush1.msra.mxu0 0.0
  %1244 = vmatprep.subr.mxu0 0.0
  %1245 = vmatpush1.msra.mxu0 0.0
  %1246 = vmatprep.subr.mxu0 0.0
  %1247 = vmatpush1.msra.mxu0 0.0
  %1248 = vmatprep.mubr.f32.mxu0 0.0
  %1249 = vmatmul.mubr.f32.gmra.mrb[0].mxu0 %v1005
  %v1250 = vpop.f32.mrb[0].mxu0
  %v1251 = vadd.f32 %v1182, %v1250
  %v1252 = vpop.f32.mrb[0].mxu0
  %1253 = vdwg.mxu0
  %v1254 = vxor.u32 %v1251, 2147483648
  %v1255 = vmul.f32 %v1254, 1.442695
  %v1256 = vpow.pop %v1255
  %v1257 = vadd.f32 %v1256, 1.0
  %v1258 = vrcp.pop %v1257
  %v1259 = vmul.f32 1.0, %v1258
  %v1260 = vmul.f32 %v1082, %v1168
  %v1261 = vtanh.pop %v1260
  %v1262 = vmul.f32 %v1259, %v1261
  %v1263 = vld [vmem:[%s51] sm:$0xff]
  %v1264 = vld [vmem:[%s51 + $0x8] sm:$0xff]
  %v1265 = vld [vmem:[%s51 + $0x10] sm:$0xff]
  %v1266 = vld [vmem:[%s51 + $0x18] sm:$0xff]
  %v1267 = vld [vmem:[%s57] sm:$0x1]
  %v1269 = vlaneseq
  %v1270 = vshrl.u32 %v1269, 7
  %v1271 = vsub.s32 0, %v1270
  %v1272 = vrot.slane %v1267, %v1271
  %vm1274 = vcmask 261120
  %v1276 = vsel %vm1274, %v1262, 0
  %1278 = vmatprep.subr.mxu0 0.0
  %1279 = vmatpush1.msra.mxu0 %v1263
  %1280 = vmatprep.subr.mxu0 0.0
  %1281 = vmatpush1.msra.mxu0 %v1264
  %1282 = vmatprep.subr.mxu0 0.0
  %1283 = vmatpush1.msra.mxu0 %v1265
  %1284 = vmatprep.subr.mxu0 0.0
  %1285 = vmatpush1.msra.mxu0 %v1266
  %1286 = vmatprep.subr.mxu0 0.0
  %1287 = vmatpush1.msra.mxu0 0.0
  %1288 = vmatprep.subr.mxu0 0.0
  %1289 = vmatpush1.msra.mxu0 0.0
  %1290 = vmatprep.subr.mxu0 0.0
  %1291 = vmatpush1.msra.mxu0 0.0
  %1292 = vmatprep.subr.mxu0 0.0
  %1293 = vmatpush1.msra.mxu0 0.0
  %1294 = vmatprep.subr.mxu0 0.0
  %1295 = vmatpush1.msra.mxu0 0.0
  %1296 = vmatprep.subr.mxu0 0.0
  %1297 = vmatpush1.msra.mxu0 0.0
  %1298 = vmatprep.subr.mxu0 0.0
  %1299 = vmatpush1.msra.mxu0 0.0
  %1300 = vmatprep.subr.mxu0 0.0
  %1301 = vmatpush1.msra.mxu0 0.0
  %1302 = vmatprep.subr.mxu0 0.0
  %1303 = vmatpush1.msra.mxu0 0.0
  %1304 = vmatprep.subr.mxu0 0.0
  %1305 = vmatpush1.msra.mxu0 0.0
  %1306 = vmatprep.subr.mxu0 0.0
  %1307 = vmatpush1.msra.mxu0 0.0
  %1308 = vmatprep.subr.mxu0 0.0
  %1309 = vmatpush1.msra.mxu0 0.0
  %1310 = vmatprep.subr.mxu0 0.0
  %1311 = vmatpush1.msra.mxu0 0.0
  %1312 = vmatprep.subr.mxu0 0.0
  %1313 = vmatpush1.msra.mxu0 0.0
  %1314 = vmatprep.subr.mxu0 0.0
  %1315 = vmatpush1.msra.mxu0 0.0
  %1316 = vmatprep.subr.mxu0 0.0
  %1317 = vmatpush1.msra.mxu0 0.0
  %1318 = vmatprep.subr.mxu0 0.0
  %1319 = vmatpush1.msra.mxu0 0.0
  %1320 = vmatprep.subr.mxu0 0.0
  %1321 = vmatpush1.msra.mxu0 0.0
  %1322 = vmatprep.subr.mxu0 0.0
  %1323 = vmatpush1.msra.mxu0 0.0
  %1324 = vmatprep.subr.mxu0 0.0
  %1325 = vmatpush1.msra.mxu0 0.0
  %1326 = vmatprep.subr.mxu0 0.0
  %1327 = vmatpush1.msra.mxu0 0.0
  %1328 = vmatprep.subr.mxu0 0.0
  %1329 = vmatpush1.msra.mxu0 0.0
  %1330 = vmatprep.subr.mxu0 0.0
  %1331 = vmatpush1.msra.mxu0 0.0
  %1332 = vmatprep.subr.mxu0 0.0
  %1333 = vmatpush1.msra.mxu0 0.0
  %1334 = vmatprep.subr.mxu0 0.0
  %1335 = vmatpush1.msra.mxu0 0.0
  %1336 = vmatprep.subr.mxu0 0.0
  %1337 = vmatpush1.msra.mxu0 0.0
  %1338 = vmatprep.subr.mxu0 0.0
  %1339 = vmatpush1.msra.mxu0 0.0
  %1340 = vmatprep.subr.mxu0 0.0
  %1341 = vmatpush1.msra.mxu0 0.0
  %1342 = vmatprep.mubr.f32.mxu0 0.0
  %1343 = vmatmul.mubr.f32.gmra.mrb[0].mxu0 %v1276
  %v1344 = vpop.f32.mrb[0].mxu0
  %v1345 = vadd.f32 %v1272, %v1344
  %v1346 = vpop.f32.mrb[0].mxu0
  %1347 = vdwg.mxu0
  %v1348 = vxor.u32 %v1345, 2147483648
  %v1349 = vmul.f32 %v1348, 1.442695
  %v1350 = vpow.pop %v1349
  %v1351 = vadd.f32 %v1350, 1.0
  %v1352 = vrcp.pop %v1351
  %v1353 = vmul.f32 1.0, %v1352
  %v1354 = vld [vmem:[%s53] sm:$0xff]
  %v1355 = vld [vmem:[%s53 + $0x8] sm:$0xff]
  %v1356 = vld [vmem:[%s53 + $0x10] sm:$0xff]
  %v1357 = vld [vmem:[%s53 + $0x18] sm:$0xff]
  %v1358 = vld [vmem:[%s59] sm:$0x1]
  %v1360 = vlaneseq
  %v1361 = vshrl.u32 %v1360, 7
  %v1362 = vsub.s32 0, %v1361
  %v1363 = vrot.slane %v1358, %v1362
  %1365 = vmatprep.subr.mxu0 0.0
  %1366 = vmatpush1.msra.mxu0 %v1354
  %1367 = vmatprep.subr.mxu0 0.0
  %1368 = vmatpush1.msra.mxu0 %v1355
  %1369 = vmatprep.subr.mxu0 0.0
  %1370 = vmatpush1.msra.mxu0 %v1356
  %1371 = vmatprep.subr.mxu0 0.0
  %1372 = vmatpush1.msra.mxu0 %v1357
  %1373 = vmatprep.subr.mxu0 0.0
  %1374 = vmatpush1.msra.mxu0 0.0
  %1375 = vmatprep.subr.mxu0 0.0
  %1376 = vmatpush1.msra.mxu0 0.0
  %1377 = vmatprep.subr.mxu0 0.0
  %1378 = vmatpush1.msra.mxu0 0.0
  %1379 = vmatprep.subr.mxu0 0.0
  %1380 = vmatpush1.msra.mxu0 0.0
  %1381 = vmatprep.subr.mxu0 0.0
  %1382 = vmatpush1.msra.mxu0 0.0
  %1383 = vmatprep.subr.mxu0 0.0
  %1384 = vmatpush1.msra.mxu0 0.0
  %1385 = vmatprep.subr.mxu0 0.0
  %1386 = vmatpush1.msra.mxu0 0.0
  %1387 = vmatprep.subr.mxu0 0.0
  %1388 = vmatpush1.msra.mxu0 0.0
  %1389 = vmatprep.subr.mxu0 0.0
  %1390 = vmatpush1.msra.mxu0 0.0
  %1391 = vmatprep.subr.mxu0 0.0
  %1392 = vmatpush1.msra.mxu0 0.0
  %1393 = vmatprep.subr.mxu0 0.0
  %1394 = vmatpush1.msra.mxu0 0.0
  %1395 = vmatprep.subr.mxu0 0.0
  %1396 = vmatpush1.msra.mxu0 0.0
  %1397 = vmatprep.subr.mxu0 0.0
  %1398 = vmatpush1.msra.mxu0 0.0
  %1399 = vmatprep.subr.mxu0 0.0
  %1400 = vmatpush1.msra.mxu0 0.0
  %1401 = vmatprep.subr.mxu0 0.0
  %1402 = vmatpush1.msra.mxu0 0.0
  %1403 = vmatprep.subr.mxu0 0.0
  %1404 = vmatpush1.msra.mxu0 0.0
  %1405 = vmatprep.subr.mxu0 0.0
  %1406 = vmatpush1.msra.mxu0 0.0
  %1407 = vmatprep.subr.mxu0 0.0
  %1408 = vmatpush1.msra.mxu0 0.0
  %1409 = vmatprep.subr.mxu0 0.0
  %1410 = vmatpush1.msra.mxu0 0.0
  %1411 = vmatprep.subr.mxu0 0.0
  %1412 = vmatpush1.msra.mxu0 0.0
  %1413 = vmatprep.subr.mxu0 0.0
  %1414 = vmatpush1.msra.mxu0 0.0
  %1415 = vmatprep.subr.mxu0 0.0
  %1416 = vmatpush1.msra.mxu0 0.0
  %1417 = vmatprep.subr.mxu0 0.0
  %1418 = vmatpush1.msra.mxu0 0.0
  %1419 = vmatprep.subr.mxu0 0.0
  %1420 = vmatpush1.msra.mxu0 0.0
  %1421 = vmatprep.subr.mxu0 0.0
  %1422 = vmatpush1.msra.mxu0 0.0
  %1423 = vmatprep.subr.mxu0 0.0
  %1424 = vmatpush1.msra.mxu0 0.0
  %1425 = vmatprep.subr.mxu0 0.0
  %1426 = vmatpush1.msra.mxu0 0.0
  %1427 = vmatprep.subr.mxu0 0.0
  %1428 = vmatpush1.msra.mxu0 0.0
  %1429 = vmatprep.mubr.f32.mxu0 0.0
  %1430 = vmatmul.mubr.f32.gmra.mrb[0].mxu0 %v1276
  %v1431 = vpop.f32.mrb[0].mxu0
  %v1432 = vadd.f32 %v1363, %v1431
  %v1433 = vpop.f32.mrb[0].mxu0
  %1434 = vdwg.mxu0
  %v1435 = vtanh.pop %v1432
  %v1436 = vld [vmem:[%s55] sm:$0xff]
  %v1437 = vld [vmem:[%s55 + $0x8] sm:$0xff]
  %v1438 = vld [vmem:[%s55 + $0x10] sm:$0xff]
  %v1439 = vld [vmem:[%s55 + $0x18] sm:$0xff]
  %v1440 = vld [vmem:[%s61] sm:$0x1]
  %v1442 = vlaneseq
  %v1443 = vshrl.u32 %v1442, 7
  %v1444 = vsub.s32 0, %v1443
  %v1445 = vrot.slane %v1440, %v1444
  %1447 = vmatprep.subr.mxu0 0.0
  %1448 = vmatpush1.msra.mxu0 %v1436
  %1449 = vmatprep.subr.mxu0 0.0
  %1450 = vmatpush1.msra.mxu0 %v1437
  %1451 = vmatprep.subr.mxu0 0.0
  %1452 = vmatpush1.msra.mxu0 %v1438
  %1453 = vmatprep.subr.mxu0 0.0
  %1454 = vmatpush1.msra.mxu0 %v1439
  %1455 = vmatprep.subr.mxu0 0.0
  %1456 = vmatpush1.msra.mxu0 0.0
  %1457 = vmatprep.subr.mxu0 0.0
  %1458 = vmatpush1.msra.mxu0 0.0
  %1459 = vmatprep.subr.mxu0 0.0
  %1460 = vmatpush1.msra.mxu0 0.0
  %1461 = vmatprep.subr.mxu0 0.0
  %1462 = vmatpush1.msra.mxu0 0.0
  %1463 = vmatprep.subr.mxu0 0.0
  %1464 = vmatpush1.msra.mxu0 0.0
  %1465 = vmatprep.subr.mxu0 0.0
  %1466 = vmatpush1.msra.mxu0 0.0
  %1467 = vmatprep.subr.mxu0 0.0
  %1468 = vmatpush1.msra.mxu0 0.0
  %1469 = vmatprep.subr.mxu0 0.0
  %1470 = vmatpush1.msra.mxu0 0.0
  %1471 = vmatprep.subr.mxu0 0.0
  %1472 = vmatpush1.msra.mxu0 0.0
  %1473 = vmatprep.subr.mxu0 0.0
  %1474 = vmatpush1.msra.mxu0 0.0
  %1475 = vmatprep.subr.mxu0 0.0
  %1476 = vmatpush1.msra.mxu0 0.0
  %1477 = vmatprep.subr.mxu0 0.0
  %1478 = vmatpush1.msra.mxu0 0.0
  %1479 = vmatprep.subr.mxu0 0.0
  %1480 = vmatpush1.msra.mxu0 0.0
  %1481 = vmatprep.subr.mxu0 0.0
  %1482 = vmatpush1.msra.mxu0 0.0
  %1483 = vmatprep.subr.mxu0 0.0
  %1484 = vmatpush1.msra.mxu0 0.0
  %1485 = vmatprep.subr.mxu0 0.0
  %1486 = vmatpush1.msra.mxu0 0.0
  %1487 = vmatprep.subr.mxu0 0.0
  %1488 = vmatpush1.msra.mxu0 0.0
  %1489 = vmatprep.subr.mxu0 0.0
  %1490 = vmatpush1.msra.mxu0 0.0
  %1491 = vmatprep.subr.mxu0 0.0
  %1492 = vmatpush1.msra.mxu0 0.0
  %1493 = vmatprep.subr.mxu0 0.0
  %1494 = vmatpush1.msra.mxu0 0.0
  %1495 = vmatprep.subr.mxu0 0.0
  %1496 = vmatpush1.msra.mxu0 0.0
  %1497 = vmatprep.subr.mxu0 0.0
  %1498 = vmatpush1.msra.mxu0 0.0
  %1499 = vmatprep.subr.mxu0 0.0
  %1500 = vmatpush1.msra.mxu0 0.0
  %1501 = vmatprep.subr.mxu0 0.0
  %1502 = vmatpush1.msra.mxu0 0.0
  %1503 = vmatprep.subr.mxu0 0.0
  %1504 = vmatpush1.msra.mxu0 0.0
  %1505 = vmatprep.subr.mxu0 0.0
  %1506 = vmatpush1.msra.mxu0 0.0
  %1507 = vmatprep.subr.mxu0 0.0
  %1508 = vmatpush1.msra.mxu0 0.0
  %1509 = vmatprep.subr.mxu0 0.0
  %1510 = vmatpush1.msra.mxu0 0.0
  %1511 = vmatprep.mubr.f32.mxu0 0.0
  %1512 = vmatmul.mubr.f32.gmra.mrb[0].mxu0 %v1276
  %v1513 = vpop.f32.mrb[0].mxu0
  %v1514 = vadd.f32 %v1445, %v1513
  %v1515 = vpop.f32.mrb[0].mxu0
  %1516 = vdwg.mxu0
  %v1517 = vxor.u32 %v1514, 2147483648
  %v1518 = vmul.f32 %v1517, 1.442695
  %v1519 = vpow.pop %v1518
  %v1520 = vadd.f32 %v1519, 1.0
  %v1521 = vrcp.pop %v1520
  %v1522 = vmul.f32 1.0, %v1521
  %v1523 = vmul.f32 %v1353, %v1435
  %v1524 = vtanh.pop %v1523
  %v1525 = vmul.f32 %v1522, %v1524
  %v1526 = vld [vmem:[%s63] sm:$0x1]
  %v1528 = vlaneseq
  %v1529 = vshrl.u32 %v1528, 7
  %v1530 = vsub.s32 0, %v1529
  %v1531 = vrot.slane %v1526, %v1530
  %v1533 = vmul.f32 %v1525, %v1531
  %v1534 = vsel %vm1274, %v1533, 0.0
  %1535 = vadd.xlane.f32.xlu0 %v1534
  %v1536 = vpop.xlane.xlu0 %1535
  %v1537 = vld [vmem:[#allocation2] sm:$0x1]
  %v1539 = vlaneseq
  %v1540 = vshrl.u32 %v1539, 7
  %v1541 = vsub.s32 0, %v1540
  %v1542 = vrot.slane %v1537, %v1541
  %v1544 = vadd.f32 %v1536, %v1542
  %v1545 = vxor.u32 %v1544, 2147483648
  %v1546 = vmul.f32 %v1545, 1.442695
  %v1547 = vpow.pop %v1546
  %v1548 = vadd.f32 %v1547, 1.0
  %v1549 = vrcp.pop %v1548
  %v1550 = vmul.f32 1.0, %v1549
  %vm1551 = vcmask 7168
  %1552 = vst.msk [vmem:[%s67] sm:$0xff] %vm1551, %v1550
  // Predicated region
  $region134: #{lstm_model_forward.1} parent=0 // pred_check
    _
  $region135: #{lstm_model_forward.1} parent=0 // pred_check_branch
    %1554 = sbr.rel (0) target = $region137
  $region136: #{lstm_model_forward.1} parent=0 // pred_region
    _
  $region137: #{lstm_model_forward.1} parent=0 // pred_fallthru
    _
  // Predicated region
  $region138: #{lstm_model_forward.1} parent=0 // pred_check
    _
  $region139: #{lstm_model_forward.1} parent=0 // pred_check_branch
    %1556 = sbr.rel (0) target = $region141
  $region140: #{lstm_model_forward.1} parent=0 // pred_region
    _
  $region141: #{lstm_model_forward.1} parent=0 // pred_fallthru
    _

</llo_original>
